<compile_context>
chip_gen: v7x
topology: tpu7x:2x2x1
jax: 0.10.0
libtpu: 0.0.40
codegen_flags: <defaults>
</compile_context>

<pallas_src>
import jax
import jax.numpy as jnp
import numpy as np
from jax.experimental import pallas as pl
from jax.experimental.pallas import tpu as pltpu


def _round_up(n, m):
    return -(-n // m) * m


def _padded_vmem_bytes(shape, itemsize=4):
    """Bytes an f32 array occupies in VMEM after (8, 128) tile padding."""
    shape = tuple(shape)
    if len(shape) == 1:
        shape = (1,) + shape
    lead = 1
    for d in shape[:-2]:
        lead *= int(d)
    r = _round_up(shape[-2], 8)
    c = _round_up(shape[-1], 128)
    return lead * r * c * itemsize


def _make_kernel(T, B_pad, Hg):
    """Kernel over padded shapes.

    x is time-major, batch-padded and flattened to (T*B_pad, D); in the packed
    weight layout gate k lives in lanes [k*Hg, (k+1)*Hg).
    """

    def kernel(x_ref, wih_ref, whh_ref, b_ref, fcw_ref, fcb_ref,
               out_ref, gx_ref):
        # ---- Prologue: input projection for ALL timesteps in one matmul ----
        # gx[t*B_pad + b, :] = x[t, b, :] @ W_ih^T + (b_ih + b_hh)
        gx_ref[...] = (
            jnp.dot(x_ref[...], wih_ref[...],
                    preferred_element_type=jnp.float32)
            + b_ref[...])

        h0 = jnp.zeros((B_pad, Hg), jnp.float32)
        c0 = jnp.zeros((B_pad, Hg), jnp.float32)

        def step(t, carry):
            h, c = carry
            row = pl.multiple_of(t * B_pad, B_pad)       # sublane-aligned
            # Read W_hh inside the step (NOT hoisted): keeping the whole
            # weight live across the unrolled loop would pin the vreg file
            # and force spills; Mosaic schedules the per-step loads.
            gates = gx_ref[pl.ds(row, B_pad), :] + jnp.dot(
                h, whh_ref[...], preferred_element_type=jnp.float32)
            # PyTorch gate order (i, f, g, o).
            i_g = jax.nn.sigmoid(gates[:, 0 * Hg:1 * Hg])
            f_g = jax.nn.sigmoid(gates[:, 1 * Hg:2 * Hg])
            g_g = jnp.tanh(gates[:, 2 * Hg:3 * Hg])
            o_g = jax.nn.sigmoid(gates[:, 3 * Hg:4 * Hg])
            c_new = f_g * c + i_g * g_g
            h_new = o_g * jnp.tanh(c_new)
            return (h_new, c_new)

        # Small T -> full unroll (LLO sees the whole serial chain);
        # large T -> partial unroll to bound instruction stream / live ranges.
        unroll = True if T <= 32 else 8
        h, _ = jax.lax.fori_loop(0, T, step, (h0, c0), unroll=unroll)

        # ---- Fused final Linear on the last hidden state ----
        # Output lanes padded to a multiple of 128 -> unmasked stores;
        # the wrapper slices the real O columns.
        out_ref[...] = (jnp.dot(h, fcw_ref[...],
                                preferred_element_type=jnp.float32)
                        + fcb_ref[...]).astype(out_ref.dtype)

    return kernel


def lstm_encoder_only(x, w_ih, w_hh, b_ih, b_hh, fc_w, fc_b):
    """Forward pass of LSTMEncoderOnly (num_layers=1).

    x:     (B, T, D)  float32
    w_ih:  (4H, D), w_hh: (4H, H), b_ih/b_hh: (4H,)   -- PyTorch layout
    fc_w:  (O, H),  fc_b: (O,)
    returns (B, O)
    """
    x = jnp.asarray(x, jnp.float32)
    B, T, D = x.shape
    H = w_hh.shape[1]
    O = fc_w.shape[0]

    B_pad = _round_up(B, 8)      # full sublanes
    # Packed gate layout: if 4*H already fills whole 128-lane groups
    # (e.g. H=32 -> 4*H=128), keep each gate at natural width Hg=H;
    # otherwise pad each gate up to a multiple of 128 lanes.
    Hg = H if (4 * H) % 128 == 0 else _round_up(H, 128)
    O_pad = _round_up(O, 128)    # unmasked output stores

    # Time-major, batch-padded, flattened input: row t*B_pad + b <-> (t, b).
    # Padded batch rows see the bias so their h/c become nonzero -- harmless:
    # the recurrence is row-independent and pad rows are sliced off below.
    # Padded H lanes stay exactly 0.
    # TODO(synk): for large T*B*D fold this rearrangement into a chunked
    # in-kernel DMA instead of an extra HBM round trip here.
    x_tm = jnp.swapaxes(x, 0, 1)                               # (T, B, D)
    x_tm = jnp.pad(x_tm, ((0, 0), (0, B_pad - B), (0, 0)))     # (T, B_pad, D)
    x_flat = x_tm.reshape(T * B_pad, D)

    # Split PyTorch weights into the 4 gates; gate k occupies lanes
    # [k*Hg, k*Hg + H) (remaining lanes, if any, are zero).
    w_ih_g = jnp.asarray(w_ih, jnp.float32).reshape(4, H, D)
    w_hh_g = jnp.asarray(w_hh, jnp.float32).reshape(4, H, H)
    bias_g = (jnp.asarray(b_ih, jnp.float32)
              + jnp.asarray(b_hh, jnp.float32)).reshape(4, H)

    wih_t = jnp.pad(jnp.transpose(w_ih_g, (2, 0, 1)),          # (D, 4, H)
                    ((0, 0), (0, 0), (0, Hg - H))
                    ).reshape(D, 4 * Hg)                       # (D, 4*Hg)
    whh_t = jnp.pad(jnp.transpose(w_hh_g, (2, 0, 1)),          # (H, 4, H)
                    ((0, Hg - H), (0, 0), (0, Hg - H))
                    ).reshape(Hg, 4 * Hg)                      # (Hg, 4*Hg)
    bias = jnp.pad(bias_g, ((0, 0), (0, Hg - H))).reshape(1, 4 * Hg)
    fcw_t = jnp.pad(jnp.asarray(fc_w, jnp.float32).T,
                    ((0, Hg - H), (0, O_pad - O)))             # (Hg, O_pad)
    fcb = jnp.pad(jnp.asarray(fc_b, jnp.float32).reshape(1, O),
                  ((0, 0), (0, O_pad - O)))                    # (1, O_pad)

    # Scoped-VMEM budget from the actual residents (everything lives in VMEM
    # exactly once; no grid -> no double-buffering of constants).
    resident = (
        _padded_vmem_bytes((T * B_pad, D))
        + _padded_vmem_bytes((D, 4 * Hg))
        + _padded_vmem_bytes((Hg, 4 * Hg))
        + _padded_vmem_bytes((1, 4 * Hg))
        + _padded_vmem_bytes((Hg, O_pad))
        + _padded_vmem_bytes((1, O_pad))
        + _padded_vmem_bytes((B_pad, O_pad))
        + _padded_vmem_bytes((T * B_pad, 4 * Hg)))             # gx scratch
    vmem_limit = int(min(max(2 * resident, 8 << 20), 64 << 20))

    vmem = pl.BlockSpec(memory_space=pltpu.MemorySpace.VMEM)
    out = pl.pallas_call(
        _make_kernel(T, B_pad, Hg),
        out_shape=jax.ShapeDtypeStruct((B_pad, O_pad), jnp.float32),
        in_specs=[vmem] * 6,
        out_specs=vmem,
        scratch_shapes=[
            pltpu.VMEM((T * B_pad, 4 * Hg), jnp.float32),   # gx = x@W_ih^T + b
        ],
        compiler_params=pltpu.CompilerParams(vmem_limit_bytes=vmem_limit),
    )(x_flat, wih_t, whh_t, bias, fcw_t, fcb)
    return out[:B, :O]


def _reference(x, w_ih, w_hh, b_ih, b_hh, fc_w, fc_b):
    """Pure-JAX reference matching torch.nn.LSTM (num_layers=1) + Linear."""
    B, T, D = x.shape
    H = w_hh.shape[1]
    h = jnp.zeros((B, H), jnp.float32)
    c = jnp.zeros((B, H), jnp.float32)

    def step(carry, x_t):
        h, c = carry
        gates = x_t @ w_ih.T + b_ih + h @ w_hh.T + b_hh
        i = jax.nn.sigmoid(gates[:, 0 * H:1 * H])
        f = jax.nn.sigmoid(gates[:, 1 * H:2 * H])
        g = jnp.tanh(gates[:, 2 * H:3 * H])
        o = jax.nn.sigmoid(gates[:, 3 * H:4 * H])
        c = f * c + i * g
        h = o * jnp.tanh(c)
        return (h, c), None

    (h, c), _ = jax.lax.scan(step, (h, c), jnp.swapaxes(x, 0, 1))
    return h @ fc_w.T + fc_b


if __name__ == "__main__":
    # Small shapes consistent with the module's forward:
    #   input_dim=4, hidden_dim=32, output_dim=1, num_layers=1
    B, T, D, H, O = 2, 8, 4, 32, 1
    key = jax.random.PRNGKey(0)
    ks = jax.random.split(key, 8)
    scale = 1.0 / np.sqrt(H)

    x = jax.random.normal(ks[0], (B, T, D), jnp.float32)
    w_ih = jax.random.uniform(ks[1], (4 * H, D), jnp.float32, -scale, scale)
    w_hh = jax.random.uniform(ks[2], (4 * H, H), jnp.float32, -scale, scale)
    b_ih = jax.random.uniform(ks[3], (4 * H,), jnp.float32, -scale, scale)
    b_hh = jax.random.uniform(ks[4], (4 * H,), jnp.float32, -scale, scale)
    fc_w = jax.random.uniform(ks[5], (O, H), jnp.float32, -scale, scale)
    fc_b = jax.random.uniform(ks[6], (O,), jnp.float32, -scale, scale)

    out = lstm_encoder_only(x, w_ih, w_hh, b_ih, b_hh, fc_w, fc_b)
    out = jax.block_until_ready(out)

    ref = _reference(x, w_ih, w_hh, b_ih, b_hh, fc_w, fc_b)
    np.testing.assert_allclose(np.asarray(out), np.asarray(ref),
                               rtol=1e-5, atol=1e-5)
    print("KERNEL_OK")
</pallas_src>

<mosaic_0001>
module attributes {stable_mosaic.version = 11 : i64} {
  func.func @kernel(%arg0: memref<64x4xf32, #tpu.memory_space<vmem>>, %arg1: memref<4x128xf32, #tpu.memory_space<vmem>>, %arg2: memref<32x128xf32, #tpu.memory_space<vmem>>, %arg3: memref<1x128xf32, #tpu.memory_space<vmem>>, %arg4: memref<32x128xf32, #tpu.memory_space<vmem>>, %arg5: memref<1x128xf32, #tpu.memory_space<vmem>>, %arg6: memref<8x128xf32, #tpu.memory_space<vmem>>, %arg7: memref<64x128xf32, #tpu.memory_space<vmem>>) attributes {dimension_semantics = [], scalar_prefetch = 0 : i64, scratch_operands = 1 : i64, tpu.core_type = #tpu.core_type<tc>} {
    %c0 = arith.constant 0 : index
    %c0_0 = arith.constant 0 : index
    %0 = vector.load %arg0[%c0, %c0_0] : memref<64x4xf32, #tpu.memory_space<vmem>>, vector<64x4xf32>
    %c0_1 = arith.constant 0 : index
    %c0_2 = arith.constant 0 : index
    %1 = vector.load %arg1[%c0_1, %c0_2] : memref<4x128xf32, #tpu.memory_space<vmem>>, vector<4x128xf32>
    %cst = arith.constant dense<0.000000e+00> : vector<64x128xf32>
    %2 = tpu.matmul %0, %1, %cst {dimension_numbers = #tpu.dot_dimension_numbers<[1], [0], [0], [1], [0, 0, 1, 1], [], []>} : vector<64x4xf32>, vector<4x128xf32>, vector<64x128xf32> -> vector<64x128xf32>
    %c0_3 = arith.constant 0 : index
    %c0_4 = arith.constant 0 : index
    %3 = vector.load %arg3[%c0_3, %c0_4] : memref<1x128xf32, #tpu.memory_space<vmem>>, vector<1x128xf32>
    %4 = vector.broadcast %3 : vector<1x128xf32> to vector<64x128xf32>
    %5 = arith.addf %2, %4 : vector<64x128xf32>
    %c0_5 = arith.constant 0 : index
    %c0_6 = arith.constant 0 : index
    %6 = vector.load %arg7[%c0_5, %c0_6] : memref<64x128xf32, #tpu.memory_space<vmem>>, vector<64x128xf32>
    tpu.vector_store %arg7[%c0_5, %c0_6], %5 {strides = array<i32>} : memref<64x128xf32, #tpu.memory_space<vmem>>, vector<64x128xf32>,
    %cst_7 = arith.constant 0.000000e+00 : f32
    %7 = vector.broadcast %cst_7 : f32 to vector<8x32xf32>
    %cst_8 = arith.constant 0.000000e+00 : f32
    %8 = vector.broadcast %cst_8 : f32 to vector<8x32xf32>
    %c0_i32 = arith.constant 0 : i32
    %c8_i32 = arith.constant 8 : i32
    %9 = arith.muli %c0_i32, %c8_i32 : i32
    %10 = tpu.assume_multiple %9, 8 : i32
    %11 = arith.index_cast %10 : i32 to index
    %c0_9 = arith.constant 0 : index
    %12 = vector.load %arg7[%11, %c0_9] : memref<64x128xf32, #tpu.memory_space<vmem>>, vector<8x128xf32>
    %c0_10 = arith.constant 0 : index
    %c0_11 = arith.constant 0 : index
    %13 = vector.load %arg2[%c0_10, %c0_11] : memref<32x128xf32, #tpu.memory_space<vmem>>, vector<32x128xf32>
    %cst_12 = arith.constant dense<0.000000e+00> : vector<8x128xf32>
    %14 = tpu.matmul %7, %13, %cst_12 {dimension_numbers = #tpu.dot_dimension_numbers<[1], [0], [0], [1], [0, 0, 1, 1], [], []>} : vector<8x32xf32>, vector<32x128xf32>, vector<8x128xf32> -> vector<8x128xf32>
    %15 = arith.addf %12, %14 : vector<8x128xf32>
    %16 = vector.extract_strided_slice %15 {offsets = [0, 0], sizes = [8, 32], strides = [1, 1]} : vector<8x128xf32> to vector<8x32xf32>
    %17 = arith.negf %16 : vector<8x32xf32>
    %18 = math.exp %17 : vector<8x32xf32>
    %cst_13 = arith.constant 1.000000e+00 : f32
    %19 = vector.broadcast %cst_13 : f32 to vector<8x32xf32>
    %20 = arith.addf %19, %18 : vector<8x32xf32>
    %21 = arith.divf %19, %20 : vector<8x32xf32>
    %22 = vector.extract_strided_slice %15 {offsets = [0, 32], sizes = [8, 32], strides = [1, 1]} : vector<8x128xf32> to vector<8x32xf32>
    %23 = arith.negf %22 : vector<8x32xf32>
    %24 = math.exp %23 : vector<8x32xf32>
    %cst_14 = arith.constant 1.000000e+00 : f32
    %25 = vector.broadcast %cst_14 : f32 to vector<8x32xf32>
    %26 = arith.addf %25, %24 : vector<8x32xf32>
    %27 = arith.divf %25, %26 : vector<8x32xf32>
    %28 = vector.extract_strided_slice %15 {offsets = [0, 64], sizes = [8, 32], strides = [1, 1]} : vector<8x128xf32> to vector<8x32xf32>
    %29 = math.tanh %28 : vector<8x32xf32>
    %30 = vector.extract_strided_slice %15 {offsets = [0, 96], sizes = [8, 32], strides = [1, 1]} : vector<8x128xf32> to vector<8x32xf32>
    %31 = arith.negf %30 : vector<8x32xf32>
    %32 = math.exp %31 : vector<8x32xf32>
    %cst_15 = arith.constant 1.000000e+00 : f32
    %33 = vector.broadcast %cst_15 : f32 to vector<8x32xf32>
    %34 = arith.addf %33, %32 : vector<8x32xf32>
    %35 = arith.divf %33, %34 : vector<8x32xf32>
    %36 = arith.mulf %27, %8 : vector<8x32xf32>
    %37 = arith.mulf %21, %29 : vector<8x32xf32>
    %38 = arith.addf %36, %37 : vector<8x32xf32>
    %39 = math.tanh %38 : vector<8x32xf32>
    %40 = arith.mulf %35, %39 : vector<8x32xf32>
    %c1_i32 = arith.constant 1 : i32
    %c8_i32_16 = arith.constant 8 : i32
    %41 = arith.muli %c1_i32, %c8_i32_16 : i32
    %42 = tpu.assume_multiple %41, 8 : i32
    %43 = arith.index_cast %42 : i32 to index
    %c0_17 = arith.constant 0 : index
    %44 = vector.load %arg7[%43, %c0_17] : memref<64x128xf32, #tpu.memory_space<vmem>>, vector<8x128xf32>
    %c0_18 = arith.constant 0 : index
    %c0_19 = arith.constant 0 : index
    %45 = vector.load %arg2[%c0_18, %c0_19] : memref<32x128xf32, #tpu.memory_space<vmem>>, vector<32x128xf32>
    %cst_20 = arith.constant dense<0.000000e+00> : vector<8x128xf32>
    %46 = tpu.matmul %40, %45, %cst_20 {dimension_numbers = #tpu.dot_dimension_numbers<[1], [0], [0], [1], [0, 0, 1, 1], [], []>} : vector<8x32xf32>, vector<32x128xf32>, vector<8x128xf32> -> vector<8x128xf32>
    %47 = arith.addf %44, %46 : vector<8x128xf32>
    %48 = vector.extract_strided_slice %47 {offsets = [0, 0], sizes = [8, 32], strides = [1, 1]} : vector<8x128xf32> to vector<8x32xf32>
    %49 = arith.negf %48 : vector<8x32xf32>
    %50 = math.exp %49 : vector<8x32xf32>
    %cst_21 = arith.constant 1.000000e+00 : f32
    %51 = vector.broadcast %cst_21 : f32 to vector<8x32xf32>
    %52 = arith.addf %51, %50 : vector<8x32xf32>
    %53 = arith.divf %51, %52 : vector<8x32xf32>
    %54 = vector.extract_strided_slice %47 {offsets = [0, 32], sizes = [8, 32], strides = [1, 1]} : vector<8x128xf32> to vector<8x32xf32>
    %55 = arith.negf %54 : vector<8x32xf32>
    %56 = math.exp %55 : vector<8x32xf32>
    %cst_22 = arith.constant 1.000000e+00 : f32
    %57 = vector.broadcast %cst_22 : f32 to vector<8x32xf32>
    %58 = arith.addf %57, %56 : vector<8x32xf32>
    %59 = arith.divf %57, %58 : vector<8x32xf32>
    %60 = vector.extract_strided_slice %47 {offsets = [0, 64], sizes = [8, 32], strides = [1, 1]} : vector<8x128xf32> to vector<8x32xf32>
    %61 = math.tanh %60 : vector<8x32xf32>
    %62 = vector.extract_strided_slice %47 {offsets = [0, 96], sizes = [8, 32], strides = [1, 1]} : vector<8x128xf32> to vector<8x32xf32>
    %63 = arith.negf %62 : vector<8x32xf32>
    %64 = math.exp %63 : vector<8x32xf32>
    %cst_23 = arith.constant 1.000000e+00 : f32
    %65 = vector.broadcast %cst_23 : f32 to vector<8x32xf32>
    %66 = arith.addf %65, %64 : vector<8x32xf32>
    %67 = arith.divf %65, %66 : vector<8x32xf32>
    %68 = arith.mulf %59, %38 : vector<8x32xf32>
    %69 = arith.mulf %53, %61 : vector<8x32xf32>
    %70 = arith.addf %68, %69 : vector<8x32xf32>
    %71 = math.tanh %70 : vector<8x32xf32>
    %72 = arith.mulf %67, %71 : vector<8x32xf32>
    %c2_i32 = arith.constant 2 : i32
    %c8_i32_24 = arith.constant 8 : i32
    %73 = arith.muli %c2_i32, %c8_i32_24 : i32
    %74 = tpu.assume_multiple %73, 8 : i32
    %75 = arith.index_cast %74 : i32 to index
    %c0_25 = arith.constant 0 : index
    %76 = vector.load %arg7[%75, %c0_25] : memref<64x128xf32, #tpu.memory_space<vmem>>, vector<8x128xf32>
    %c0_26 = arith.constant 0 : index
    %c0_27 = arith.constant 0 : index
    %77 = vector.load %arg2[%c0_26, %c0_27] : memref<32x128xf32, #tpu.memory_space<vmem>>, vector<32x128xf32>
    %cst_28 = arith.constant dense<0.000000e+00> : vector<8x128xf32>
    %78 = tpu.matmul %72, %77, %cst_28 {dimension_numbers = #tpu.dot_dimension_numbers<[1], [0], [0], [1], [0, 0, 1, 1], [], []>} : vector<8x32xf32>, vector<32x128xf32>, vector<8x128xf32> -> vector<8x128xf32>
    %79 = arith.addf %76, %78 : vector<8x128xf32>
    %80 = vector.extract_strided_slice %79 {offsets = [0, 0], sizes = [8, 32], strides = [1, 1]} : vector<8x128xf32> to vector<8x32xf32>
    %81 = arith.negf %80 : vector<8x32xf32>
    %82 = math.exp %81 : vector<8x32xf32>
    %cst_29 = arith.constant 1.000000e+00 : f32
    %83 = vector.broadcast %cst_29 : f32 to vector<8x32xf32>
    %84 = arith.addf %83, %82 : vector<8x32xf32>
    %85 = arith.divf %83, %84 : vector<8x32xf32>
    %86 = vector.extract_strided_slice %79 {offsets = [0, 32], sizes = [8, 32], strides = [1, 1]} : vector<8x128xf32> to vector<8x32xf32>
    %87 = arith.negf %86 : vector<8x32xf32>
    %88 = math.exp %87 : vector<8x32xf32>
    %cst_30 = arith.constant 1.000000e+00 : f32
    %89 = vector.broadcast %cst_30 : f32 to vector<8x32xf32>
    %90 = arith.addf %89, %88 : vector<8x32xf32>
    %91 = arith.divf %89, %90 : vector<8x32xf32>
    %92 = vector.extract_strided_slice %79 {offsets = [0, 64], sizes = [8, 32], strides = [1, 1]} : vector<8x128xf32> to vector<8x32xf32>
    %93 = math.tanh %92 : vector<8x32xf32>
    %94 = vector.extract_strided_slice %79 {offsets = [0, 96], sizes = [8, 32], strides = [1, 1]} : vector<8x128xf32> to vector<8x32xf32>
    %95 = arith.negf %94 : vector<8x32xf32>
    %96 = math.exp %95 : vector<8x32xf32>
    %cst_31 = arith.constant 1.000000e+00 : f32
    %97 = vector.broadcast %cst_31 : f32 to vector<8x32xf32>
    %98 = arith.addf %97, %96 : vector<8x32xf32>
    %99 = arith.divf %97, %98 : vector<8x32xf32>
    %100 = arith.mulf %91, %70 : vector<8x32xf32>
    %101 = arith.mulf %85, %93 : vector<8x32xf32>
    %102 = arith.addf %100, %101 : vector<8x32xf32>
    %103 = math.tanh %102 : vector<8x32xf32>
    %104 = arith.mulf %99, %103 : vector<8x32xf32>
    %c3_i32 = arith.constant 3 : i32
    %c8_i32_32 = arith.constant 8 : i32
    %105 = arith.muli %c3_i32, %c8_i32_32 : i32
    %106 = tpu.assume_multiple %105, 8 : i32
    %107 = arith.index_cast %106 : i32 to index
    %c0_33 = arith.constant 0 : index
    %108 = vector.load %arg7[%107, %c0_33] : memref<64x128xf32, #tpu.memory_space<vmem>>, vector<8x128xf32>
    %c0_34 = arith.constant 0 : index
    %c0_35 = arith.constant 0 : index
    %109 = vector.load %arg2[%c0_34, %c0_35] : memref<32x128xf32, #tpu.memory_space<vmem>>, vector<32x128xf32>
    %cst_36 = arith.constant dense<0.000000e+00> : vector<8x128xf32>
    %110 = tpu.matmul %104, %109, %cst_36 {dimension_numbers = #tpu.dot_dimension_numbers<[1], [0], [0], [1], [0, 0, 1, 1], [], []>} : vector<8x32xf32>, vector<32x128xf32>, vector<8x128xf32> -> vector<8x128xf32>
    %111 = arith.addf %108, %110 : vector<8x128xf32>
    %112 = vector.extract_strided_slice %111 {offsets = [0, 0], sizes = [8, 32], strides = [1, 1]} : vector<8x128xf32> to vector<8x32xf32>
    %113 = arith.negf %112 : vector<8x32xf32>
    %114 = math.exp %113 : vector<8x32xf32>
    %cst_37 = arith.constant 1.000000e+00 : f32
    %115 = vector.broadcast %cst_37 : f32 to vector<8x32xf32>
    %116 = arith.addf %115, %114 : vector<8x32xf32>
    %117 = arith.divf %115, %116 : vector<8x32xf32>
    %118 = vector.extract_strided_slice %111 {offsets = [0, 32], sizes = [8, 32], strides = [1, 1]} : vector<8x128xf32> to vector<8x32xf32>
    %119 = arith.negf %118 : vector<8x32xf32>
    %120 = math.exp %119 : vector<8x32xf32>
    %cst_38 = arith.constant 1.000000e+00 : f32
    %121 = vector.broadcast %cst_38 : f32 to vector<8x32xf32>
    %122 = arith.addf %121, %120 : vector<8x32xf32>
    %123 = arith.divf %121, %122 : vector<8x32xf32>
    %124 = vector.extract_strided_slice %111 {offsets = [0, 64], sizes = [8, 32], strides = [1, 1]} : vector<8x128xf32> to vector<8x32xf32>
    %125 = math.tanh %124 : vector<8x32xf32>
    %126 = vector.extract_strided_slice %111 {offsets = [0, 96], sizes = [8, 32], strides = [1, 1]} : vector<8x128xf32> to vector<8x32xf32>
    %127 = arith.negf %126 : vector<8x32xf32>
    %128 = math.exp %127 : vector<8x32xf32>
    %cst_39 = arith.constant 1.000000e+00 : f32
    %129 = vector.broadcast %cst_39 : f32 to vector<8x32xf32>
    %130 = arith.addf %129, %128 : vector<8x32xf32>
    %131 = arith.divf %129, %130 : vector<8x32xf32>
    %132 = arith.mulf %123, %102 : vector<8x32xf32>
    %133 = arith.mulf %117, %125 : vector<8x32xf32>
    %134 = arith.addf %132, %133 : vector<8x32xf32>
    %135 = math.tanh %134 : vector<8x32xf32>
    %136 = arith.mulf %131, %135 : vector<8x32xf32>
    %c4_i32 = arith.constant 4 : i32
    %c8_i32_40 = arith.constant 8 : i32
    %137 = arith.muli %c4_i32, %c8_i32_40 : i32
    %138 = tpu.assume_multiple %137, 8 : i32
    %139 = arith.index_cast %138 : i32 to index
    %c0_41 = arith.constant 0 : index
    %140 = vector.load %arg7[%139, %c0_41] : memref<64x128xf32, #tpu.memory_space<vmem>>, vector<8x128xf32>
    %c0_42 = arith.constant 0 : index
    %c0_43 = arith.constant 0 : index
    %141 = vector.load %arg2[%c0_42, %c0_43] : memref<32x128xf32, #tpu.memory_space<vmem>>, vector<32x128xf32>
    %cst_44 = arith.constant dense<0.000000e+00> : vector<8x128xf32>
    %142 = tpu.matmul %136, %141, %cst_44 {dimension_numbers = #tpu.dot_dimension_numbers<[1], [0], [0], [1], [0, 0, 1, 1], [], []>} : vector<8x32xf32>, vector<32x128xf32>, vector<8x128xf32> -> vector<8x128xf32>
    %143 = arith.addf %140, %142 : vector<8x128xf32>
    %144 = vector.extract_strided_slice %143 {offsets = [0, 0], sizes = [8, 32], strides = [1, 1]} : vector<8x128xf32> to vector<8x32xf32>
    %145 = arith.negf %144 : vector<8x32xf32>
    %146 = math.exp %145 : vector<8x32xf32>
    %cst_45 = arith.constant 1.000000e+00 : f32
    %147 = vector.broadcast %cst_45 : f32 to vector<8x32xf32>
    %148 = arith.addf %147, %146 : vector<8x32xf32>
    %149 = arith.divf %147, %148 : vector<8x32xf32>
    %150 = vector.extract_strided_slice %143 {offsets = [0, 32], sizes = [8, 32], strides = [1, 1]} : vector<8x128xf32> to vector<8x32xf32>
    %151 = arith.negf %150 : vector<8x32xf32>
    %152 = math.exp %151 : vector<8x32xf32>
    %cst_46 = arith.constant 1.000000e+00 : f32
    %153 = vector.broadcast %cst_46 : f32 to vector<8x32xf32>
    %154 = arith.addf %153, %152 : vector<8x32xf32>
    %155 = arith.divf %153, %154 : vector<8x32xf32>
    %156 = vector.extract_strided_slice %143 {offsets = [0, 64], sizes = [8, 32], strides = [1, 1]} : vector<8x128xf32> to vector<8x32xf32>
    %157 = math.tanh %156 : vector<8x32xf32>
    %158 = vector.extract_strided_slice %143 {offsets = [0, 96], sizes = [8, 32], strides = [1, 1]} : vector<8x128xf32> to vector<8x32xf32>
    %159 = arith.negf %158 : vector<8x32xf32>
    %160 = math.exp %159 : vector<8x32xf32>
    %cst_47 = arith.constant 1.000000e+00 : f32
    %161 = vector.broadcast %cst_47 : f32 to vector<8x32xf32>
    %162 = arith.addf %161, %160 : vector<8x32xf32>
    %163 = arith.divf %161, %162 : vector<8x32xf32>
    %164 = arith.mulf %155, %134 : vector<8x32xf32>
    %165 = arith.mulf %149, %157 : vector<8x32xf32>
    %166 = arith.addf %164, %165 : vector<8x32xf32>
    %167 = math.tanh %166 : vector<8x32xf32>
    %168 = arith.mulf %163, %167 : vector<8x32xf32>
    %c5_i32 = arith.constant 5 : i32
    %c8_i32_48 = arith.constant 8 : i32
    %169 = arith.muli %c5_i32, %c8_i32_48 : i32
    %170 = tpu.assume_multiple %169, 8 : i32
    %171 = arith.index_cast %170 : i32 to index
    %c0_49 = arith.constant 0 : index
    %172 = vector.load %arg7[%171, %c0_49] : memref<64x128xf32, #tpu.memory_space<vmem>>, vector<8x128xf32>
    %c0_50 = arith.constant 0 : index
    %c0_51 = arith.constant 0 : index
    %173 = vector.load %arg2[%c0_50, %c0_51] : memref<32x128xf32, #tpu.memory_space<vmem>>, vector<32x128xf32>
    %cst_52 = arith.constant dense<0.000000e+00> : vector<8x128xf32>
    %174 = tpu.matmul %168, %173, %cst_52 {dimension_numbers = #tpu.dot_dimension_numbers<[1], [0], [0], [1], [0, 0, 1, 1], [], []>} : vector<8x32xf32>, vector<32x128xf32>, vector<8x128xf32> -> vector<8x128xf32>
    %175 = arith.addf %172, %174 : vector<8x128xf32>
    %176 = vector.extract_strided_slice %175 {offsets = [0, 0], sizes = [8, 32], strides = [1, 1]} : vector<8x128xf32> to vector<8x32xf32>
    %177 = arith.negf %176 : vector<8x32xf32>
    %178 = math.exp %177 : vector<8x32xf32>
    %cst_53 = arith.constant 1.000000e+00 : f32
    %179 = vector.broadcast %cst_53 : f32 to vector<8x32xf32>
    %180 = arith.addf %179, %178 : vector<8x32xf32>
    %181 = arith.divf %179, %180 : vector<8x32xf32>
    %182 = vector.extract_strided_slice %175 {offsets = [0, 32], sizes = [8, 32], strides = [1, 1]} : vector<8x128xf32> to vector<8x32xf32>
    %183 = arith.negf %182 : vector<8x32xf32>
    %184 = math.exp %183 : vector<8x32xf32>
    %cst_54 = arith.constant 1.000000e+00 : f32
    %185 = vector.broadcast %cst_54 : f32 to vector<8x32xf32>
    %186 = arith.addf %185, %184 : vector<8x32xf32>
    %187 = arith.divf %185, %186 : vector<8x32xf32>
    %188 = vector.extract_strided_slice %175 {offsets = [0, 64], sizes = [8, 32], strides = [1, 1]} : vector<8x128xf32> to vector<8x32xf32>
    %189 = math.tanh %188 : vector<8x32xf32>
    %190 = vector.extract_strided_slice %175 {offsets = [0, 96], sizes = [8, 32], strides = [1, 1]} : vector<8x128xf32> to vector<8x32xf32>
    %191 = arith.negf %190 : vector<8x32xf32>
    %192 = math.exp %191 : vector<8x32xf32>
    %cst_55 = arith.constant 1.000000e+00 : f32
    %193 = vector.broadcast %cst_55 : f32 to vector<8x32xf32>
    %194 = arith.addf %193, %192 : vector<8x32xf32>
    %195 = arith.divf %193, %194 : vector<8x32xf32>
    %196 = arith.mulf %187, %166 : vector<8x32xf32>
    %197 = arith.mulf %181, %189 : vector<8x32xf32>
    %198 = arith.addf %196, %197 : vector<8x32xf32>
    %199 = math.tanh %198 : vector<8x32xf32>
    %200 = arith.mulf %195, %199 : vector<8x32xf32>
    %c6_i32 = arith.constant 6 : i32
    %c8_i32_56 = arith.constant 8 : i32
    %201 = arith.muli %c6_i32, %c8_i32_56 : i32
    %202 = tpu.assume_multiple %201, 8 : i32
    %203 = arith.index_cast %202 : i32 to index
    %c0_57 = arith.constant 0 : index
    %204 = vector.load %arg7[%203, %c0_57] : memref<64x128xf32, #tpu.memory_space<vmem>>, vector<8x128xf32>
    %c0_58 = arith.constant 0 : index
    %c0_59 = arith.constant 0 : index
    %205 = vector.load %arg2[%c0_58, %c0_59] : memref<32x128xf32, #tpu.memory_space<vmem>>, vector<32x128xf32>
    %cst_60 = arith.constant dense<0.000000e+00> : vector<8x128xf32>
    %206 = tpu.matmul %200, %205, %cst_60 {dimension_numbers = #tpu.dot_dimension_numbers<[1], [0], [0], [1], [0, 0, 1, 1], [], []>} : vector<8x32xf32>, vector<32x128xf32>, vector<8x128xf32> -> vector<8x128xf32>
    %207 = arith.addf %204, %206 : vector<8x128xf32>
    %208 = vector.extract_strided_slice %207 {offsets = [0, 0], sizes = [8, 32], strides = [1, 1]} : vector<8x128xf32> to vector<8x32xf32>
    %209 = arith.negf %208 : vector<8x32xf32>
    %210 = math.exp %209 : vector<8x32xf32>
    %cst_61 = arith.constant 1.000000e+00 : f32
    %211 = vector.broadcast %cst_61 : f32 to vector<8x32xf32>
    %212 = arith.addf %211, %210 : vector<8x32xf32>
    %213 = arith.divf %211, %212 : vector<8x32xf32>
    %214 = vector.extract_strided_slice %207 {offsets = [0, 32], sizes = [8, 32], strides = [1, 1]} : vector<8x128xf32> to vector<8x32xf32>
    %215 = arith.negf %214 : vector<8x32xf32>
    %216 = math.exp %215 : vector<8x32xf32>
    %cst_62 = arith.constant 1.000000e+00 : f32
    %217 = vector.broadcast %cst_62 : f32 to vector<8x32xf32>
    %218 = arith.addf %217, %216 : vector<8x32xf32>
    %219 = arith.divf %217, %218 : vector<8x32xf32>
    %220 = vector.extract_strided_slice %207 {offsets = [0, 64], sizes = [8, 32], strides = [1, 1]} : vector<8x128xf32> to vector<8x32xf32>
    %221 = math.tanh %220 : vector<8x32xf32>
    %222 = vector.extract_strided_slice %207 {offsets = [0, 96], sizes = [8, 32], strides = [1, 1]} : vector<8x128xf32> to vector<8x32xf32>
    %223 = arith.negf %222 : vector<8x32xf32>
    %224 = math.exp %223 : vector<8x32xf32>
    %cst_63 = arith.constant 1.000000e+00 : f32
    %225 = vector.broadcast %cst_63 : f32 to vector<8x32xf32>
    %226 = arith.addf %225, %224 : vector<8x32xf32>
    %227 = arith.divf %225, %226 : vector<8x32xf32>
    %228 = arith.mulf %219, %198 : vector<8x32xf32>
    %229 = arith.mulf %213, %221 : vector<8x32xf32>
    %230 = arith.addf %228, %229 : vector<8x32xf32>
    %231 = math.tanh %230 : vector<8x32xf32>
    %232 = arith.mulf %227, %231 : vector<8x32xf32>
    %c7_i32 = arith.constant 7 : i32
    %c8_i32_64 = arith.constant 8 : i32
    %233 = arith.muli %c7_i32, %c8_i32_64 : i32
    %234 = tpu.assume_multiple %233, 8 : i32
    %235 = arith.index_cast %234 : i32 to index
    %c0_65 = arith.constant 0 : index
    %236 = vector.load %arg7[%235, %c0_65] : memref<64x128xf32, #tpu.memory_space<vmem>>, vector<8x128xf32>
    %c0_66 = arith.constant 0 : index
    %c0_67 = arith.constant 0 : index
    %237 = vector.load %arg2[%c0_66, %c0_67] : memref<32x128xf32, #tpu.memory_space<vmem>>, vector<32x128xf32>
    %cst_68 = arith.constant dense<0.000000e+00> : vector<8x128xf32>
    %238 = tpu.matmul %232, %237, %cst_68 {dimension_numbers = #tpu.dot_dimension_numbers<[1], [0], [0], [1], [0, 0, 1, 1], [], []>} : vector<8x32xf32>, vector<32x128xf32>, vector<8x128xf32> -> vector<8x128xf32>
    %239 = arith.addf %236, %238 : vector<8x128xf32>
    %240 = vector.extract_strided_slice %239 {offsets = [0, 0], sizes = [8, 32], strides = [1, 1]} : vector<8x128xf32> to vector<8x32xf32>
    %241 = arith.negf %240 : vector<8x32xf32>
    %242 = math.exp %241 : vector<8x32xf32>
    %cst_69 = arith.constant 1.000000e+00 : f32
    %243 = vector.broadcast %cst_69 : f32 to vector<8x32xf32>
    %244 = arith.addf %243, %242 : vector<8x32xf32>
    %245 = arith.divf %243, %244 : vector<8x32xf32>
    %246 = vector.extract_strided_slice %239 {offsets = [0, 32], sizes = [8, 32], strides = [1, 1]} : vector<8x128xf32> to vector<8x32xf32>
    %247 = arith.negf %246 : vector<8x32xf32>
    %248 = math.exp %247 : vector<8x32xf32>
    %cst_70 = arith.constant 1.000000e+00 : f32
    %249 = vector.broadcast %cst_70 : f32 to vector<8x32xf32>
    %250 = arith.addf %249, %248 : vector<8x32xf32>
    %251 = arith.divf %249, %250 : vector<8x32xf32>
    %252 = vector.extract_strided_slice %239 {offsets = [0, 64], sizes = [8, 32], strides = [1, 1]} : vector<8x128xf32> to vector<8x32xf32>
    %253 = math.tanh %252 : vector<8x32xf32>
    %254 = vector.extract_strided_slice %239 {offsets = [0, 96], sizes = [8, 32], strides = [1, 1]} : vector<8x128xf32> to vector<8x32xf32>
    %255 = arith.negf %254 : vector<8x32xf32>
    %256 = math.exp %255 : vector<8x32xf32>
    %cst_71 = arith.constant 1.000000e+00 : f32
    %257 = vector.broadcast %cst_71 : f32 to vector<8x32xf32>
    %258 = arith.addf %257, %256 : vector<8x32xf32>
    %259 = arith.divf %257, %258 : vector<8x32xf32>
    %260 = arith.mulf %251, %230 : vector<8x32xf32>
    %261 = arith.mulf %245, %253 : vector<8x32xf32>
    %262 = arith.addf %260, %261 : vector<8x32xf32>
    %263 = math.tanh %262 : vector<8x32xf32>
    %264 = arith.mulf %259, %263 : vector<8x32xf32>
    %c8_i32_72 = arith.constant 8 : i32
    %c0_73 = arith.constant 0 : index
    %c0_74 = arith.constant 0 : index
    %265 = vector.load %arg4[%c0_73, %c0_74] : memref<32x128xf32, #tpu.memory_space<vmem>>, vector<32x128xf32>
    %cst_75 = arith.constant dense<0.000000e+00> : vector<8x128xf32>
    %266 = tpu.matmul %264, %265, %cst_75 {dimension_numbers = #tpu.dot_dimension_numbers<[1], [0], [0], [1], [0, 0, 1, 1], [], []>} : vector<8x32xf32>, vector<32x128xf32>, vector<8x128xf32> -> vector<8x128xf32>
    %c0_76 = arith.constant 0 : index
    %c0_77 = arith.constant 0 : index
    %267 = vector.load %arg5[%c0_76, %c0_77] : memref<1x128xf32, #tpu.memory_space<vmem>>, vector<1x128xf32>
    %268 = vector.broadcast %267 : vector<1x128xf32> to vector<8x128xf32>
    %269 = arith.addf %266, %268 : vector<8x128xf32>
    %c0_78 = arith.constant 0 : index
    %c0_79 = arith.constant 0 : index
    %270 = vector.load %arg6[%c0_78, %c0_79] : memref<8x128xf32, #tpu.memory_space<vmem>>, vector<8x128xf32>
    tpu.vector_store %arg6[%c0_78, %c0_79], %269 {strides = array<i32>} : memref<8x128xf32, #tpu.memory_space<vmem>>, vector<8x128xf32>,
    return
  }
}

</mosaic_0001>

<llo_original>
// kernel: tpu_custom_call.1
$region0: #{tpu_custom_call.1}
  #allocation0 [shape = 'u32[]', space=smem, size = 0x4, offset = 0x4, fixed_abs, tag = 'smem constant byte address 0x4 - core index']
  #allocation1 [shape = 'u32[144,128]{1,0:T(1,128)}', space=vmem, size = 0x12000, scoped, tag = 'internal scratch']
  #allocation2 [shape = 'f32[64,128]{1,0:T(8,128)}', space=vmem, size = 0x8000, scoped, tag = 'scratch operand']
  %s0 = inlined_call_operand.vmem [shape: f32[64,4], index: 0, kind: input, shape index: {}]
  %s1 = inlined_call_operand.vmem [shape: f32[4,128], index: 1, kind: input, shape index: {}]
  %s2 = inlined_call_operand.vmem [shape: f32[32,128], index: 2, kind: input, shape index: {}]
  %s3 = inlined_call_operand.vmem [shape: f32[1,128], index: 3, kind: input, shape index: {}]
  %s4 = inlined_call_operand.vmem [shape: f32[32,128], index: 4, kind: input, shape index: {}]
  %s5 = inlined_call_operand.vmem [shape: f32[1,128], index: 5, kind: input, shape index: {}]
  %s6 = inlined_call_operand.hbm [shape: f32[8,128], index: 6, kind: output, shape index: {}]
  %s7 = sld [smem:[#allocation0]]
  $region34: #{tpu_custom_call.1} parent=0
    _
  %s9 = ssub.s32 1, %s7
  %s10 = scalar_select 0, %s9, %s7
  $region1: #{tpu_custom_call.1} parent=0
    #allocation3 [shape = 'u8[4096]{0}', space=vmem, size = 0x1000, scoped, tag = 'output window, operand 0, single buffered']
    #allocation4 [shape = 's32[1]{0}', space=sflag, size = 0x4, scoped, tag = 'scoped memory for tpu_custom_call.1']
    %11 = vsyncpa [#allocation4], 0
    // Predicated region
    $region2: #{tpu_custom_call.1} parent=1 // pred_check
      _
    $region3: #{tpu_custom_call.1} parent=1 // pred_check_branch
      %13 = sbr.rel (0) target = $region5
    $region4: #{tpu_custom_call.1} parent=1 // pred_region
      _
    $region5: #{tpu_custom_call.1} parent=1 // pred_fallthru
      _
    // Predicated region
    $region6: #{tpu_custom_call.1} parent=1 // pred_check
      _
    $region7: #{tpu_custom_call.1} parent=1 // pred_check_branch
      %15 = sbr.rel (0) target = $region9
    $region8: #{tpu_custom_call.1} parent=1 // pred_region
      _
    $region9: #{tpu_custom_call.1} parent=1 // pred_fallthru
      _
    // Predicated region
    $region10: #{tpu_custom_call.1} parent=1 // pred_check
      _
    $region11: #{tpu_custom_call.1} parent=1 // pred_check_branch
      %17 = sbr.rel (0) target = $region13
    $region12: #{tpu_custom_call.1} parent=1 // pred_region
      _
    $region13: #{tpu_custom_call.1} parent=1 // pred_fallthru
      _
    // Predicated region
    $region14: #{tpu_custom_call.1} parent=1 // pred_check
      _
    $region15: #{tpu_custom_call.1} parent=1 // pred_check_branch
      %19 = sbr.rel (0) target = $region17
    $region16: #{tpu_custom_call.1} parent=1 // pred_region
      _
    $region17: #{tpu_custom_call.1} parent=1 // pred_fallthru
      _
    // Predicated region
    $region18: #{tpu_custom_call.1} parent=1 // pred_check
      _
    $region19: #{tpu_custom_call.1} parent=1 // pred_check_branch
      %21 = sbr.rel (0) target = $region21
    $region20: #{tpu_custom_call.1} parent=1 // pred_region
      _
    $region21: #{tpu_custom_call.1} parent=1 // pred_fallthru
      _
    // Predicated region
    $region22: #{tpu_custom_call.1} parent=1 // pred_check
      _
    $region23: #{tpu_custom_call.1} parent=1 // pred_check_branch
      %23 = sbr.rel (0) target = $region25
    $region24: #{tpu_custom_call.1} parent=1 // pred_region
      _
    $region25: #{tpu_custom_call.1} parent=1 // pred_fallthru
      _
    %v24 = vld [vmem:[%s0] sm:$0xff]
    %v25 = vld [vmem:[%s0 + $0x8] sm:$0xff]
    %v26 = vld [vmem:[%s0 + $0x10] sm:$0xff]
    %v27 = vld [vmem:[%s0 + $0x18] sm:$0xff]
    %v28 = vld [vmem:[%s0 + $0x20] sm:$0xff]
    %v29 = vld [vmem:[%s0 + $0x28] sm:$0xff]
    %v30 = vld [vmem:[%s0 + $0x30] sm:$0xff]
    %v31 = vld [vmem:[%s0 + $0x38] sm:$0xff]
    %v32 = vld [vmem:[%s1] sm:$0xf]
    %v33 = vld [vmem:[%s3] sm:$0x1]
    %v35 = vlaneseq
    %v36 = vshrl.u32 %v35, 7
    %v37 = vsub.s32 0, %v36
    %v38 = vrot.slane %v33, %v37
    %vm40 = vcmask 31744
    %v42 = vsel %vm40, %v24, 0
    %v45 = vsel %vm40, %v25, 0
    %v48 = vsel %vm40, %v26, 0
    %v51 = vsel %vm40, %v27, 0
    %v54 = vsel %vm40, %v28, 0
    %v57 = vsel %vm40, %v29, 0
    %v60 = vsel %vm40, %v30, 0
    %v63 = vsel %vm40, %v31, 0
    %vm65 = vcmask 1043456
    %v67 = vsel %vm65, %v32, 0
    %69 = vmatprep.subr.mxu0 0.0
    %70 = vmatpush1.msra.mxu0 %v67
    %71 = vmatprep.subr.mxu0 0.0
    %72 = vmatpush1.msra.mxu0 0.0
    %73 = vmatprep.subr.mxu0 0.0
    %74 = vmatpush1.msra.mxu0 0.0
    %75 = vmatprep.subr.mxu0 0.0
    %76 = vmatpush1.msra.mxu0 0.0
    %77 = vmatprep.subr.mxu0 0.0
    %78 = vmatpush1.msra.mxu0 0.0
    %79 = vmatprep.subr.mxu0 0.0
    %80 = vmatpush1.msra.mxu0 0.0
    %81 = vmatprep.subr.mxu0 0.0
    %82 = vmatpush1.msra.mxu0 0.0
    %83 = vmatprep.subr.mxu0 0.0
    %84 = vmatpush1.msra.mxu0 0.0
    %85 = vmatprep.subr.mxu0 0.0
    %86 = vmatpush1.msra.mxu0 0.0
    %87 = vmatprep.subr.mxu0 0.0
    %88 = vmatpush1.msra.mxu0 0.0
    %89 = vmatprep.subr.mxu0 0.0
    %90 = vmatpush1.msra.mxu0 0.0
    %91 = vmatprep.subr.mxu0 0.0
    %92 = vmatpush1.msra.mxu0 0.0
    %93 = vmatprep.subr.mxu0 0.0
    %94 = vmatpush1.msra.mxu0 0.0
    %95 = vmatprep.subr.mxu0 0.0
    %96 = vmatpush1.msra.mxu0 0.0
    %97 = vmatprep.subr.mxu0 0.0
    %98 = vmatpush1.msra.mxu0 0.0
    %99 = vmatprep.subr.mxu0 0.0
    %100 = vmatpush1.msra.mxu0 0.0
    %101 = vmatprep.subr.mxu0 0.0
    %102 = vmatpush1.msra.mxu0 0.0
    %103 = vmatprep.subr.mxu0 0.0
    %104 = vmatpush1.msra.mxu0 0.0
    %105 = vmatprep.subr.mxu0 0.0
    %106 = vmatpush1.msra.mxu0 0.0
    %107 = vmatprep.subr.mxu0 0.0
    %108 = vmatpush1.msra.mxu0 0.0
    %109 = vmatprep.subr.mxu0 0.0
    %110 = vmatpush1.msra.mxu0 0.0
    %111 = vmatprep.subr.mxu0 0.0
    %112 = vmatpush1.msra.mxu0 0.0
    %113 = vmatprep.subr.mxu0 0.0
    %114 = vmatpush1.msra.mxu0 0.0
    %115 = vmatprep.subr.mxu0 0.0
    %116 = vmatpush1.msra.mxu0 0.0
    %117 = vmatprep.subr.mxu0 0.0
    %118 = vmatpush1.msra.mxu0 0.0
    %119 = vmatprep.subr.mxu0 0.0
    %120 = vmatpush1.msra.mxu0 0.0
    %121 = vmatprep.subr.mxu0 0.0
    %122 = vmatpush1.msra.mxu0 0.0
    %123 = vmatprep.subr.mxu0 0.0
    %124 = vmatpush1.msra.mxu0 0.0
    %125 = vmatprep.subr.mxu0 0.0
    %126 = vmatpush1.msra.mxu0 0.0
    %127 = vmatprep.subr.mxu0 0.0
    %128 = vmatpush1.msra.mxu0 0.0
    %129 = vmatprep.subr.mxu0 0.0
    %130 = vmatpush1.msra.mxu0 0.0
    %131 = vmatprep.subr.mxu0 0.0
    %132 = vmatpush1.msra.mxu0 0.0
    %133 = vmatprep.mubr.f32.mxu0 0.0
    %134 = vmatmul.mubr.f32.gmra.mrb[0].mxu0 %v42
    %v135 = vpop.f32.mrb[0].mxu0
    %v136 = vadd.f32 %v38, %v135
    %v137 = vpop.f32.mrb[0].mxu0
    %138 = vmatprep.mubr.f32.mxu0 0.0
    %139 = vmatmul.mubr.f32.gmra.mrb[0].mxu0 %v45
    %v140 = vpop.f32.mrb[0].mxu0
    %v141 = vadd.f32 %v38, %v140
    %v142 = vpop.f32.mrb[0].mxu0
    %143 = vmatprep.mubr.f32.mxu0 0.0
    %144 = vmatmul.mubr.f32.gmra.mrb[0].mxu0 %v48
    %v145 = vpop.f32.mrb[0].mxu0
    %v146 = vadd.f32 %v38, %v145
    %v147 = vpop.f32.mrb[0].mxu0
    %148 = vmatprep.mubr.f32.mxu0 0.0
    %149 = vmatmul.mubr.f32.gmra.mrb[0].mxu0 %v51
    %v150 = vpop.f32.mrb[0].mxu0
    %v151 = vadd.f32 %v38, %v150
    %v152 = vpop.f32.mrb[0].mxu0
    %153 = vmatprep.mubr.f32.mxu0 0.0
    %154 = vmatmul.mubr.f32.gmra.mrb[0].mxu0 %v54
    %v155 = vpop.f32.mrb[0].mxu0
    %v156 = vadd.f32 %v38, %v155
    %v157 = vpop.f32.mrb[0].mxu0
    %158 = vmatprep.mubr.f32.mxu0 0.0
    %159 = vmatmul.mubr.f32.gmra.mrb[0].mxu0 %v57
    %v160 = vpop.f32.mrb[0].mxu0
    %v161 = vadd.f32 %v38, %v160
    %v162 = vpop.f32.mrb[0].mxu0
    %163 = vmatprep.mubr.f32.mxu0 0.0
    %164 = vmatmul.mubr.f32.gmra.mrb[0].mxu0 %v60
    %v165 = vpop.f32.mrb[0].mxu0
    %v166 = vadd.f32 %v38, %v165
    %v167 = vpop.f32.mrb[0].mxu0
    %168 = vmatprep.mubr.f32.mxu0 0.0
    %169 = vmatmul.mubr.f32.gmra.mrb[0].mxu0 %v63
    %v170 = vpop.f32.mrb[0].mxu0
    %v171 = vadd.f32 %v38, %v170
    %v172 = vpop.f32.mrb[0].mxu0
    %173 = vdwg.mxu0
    %174 = vst [vmem:[#allocation2] sm:$0xff] %v136
    %175 = vst [vmem:[#allocation2 + $0x8] sm:$0xff] %v141
    %176 = vst [vmem:[#allocation2 + $0x10] sm:$0xff] %v146
    %177 = vst [vmem:[#allocation2 + $0x18] sm:$0xff] %v151
    %178 = vst [vmem:[#allocation2 + $0x20] sm:$0xff] %v156
    %179 = vst [vmem:[#allocation2 + $0x28] sm:$0xff] %v161
    %180 = vst [vmem:[#allocation2 + $0x30] sm:$0xff] %v166
    %181 = vst [vmem:[#allocation2 + $0x38] sm:$0xff] %v171
    %v182 = vld [vmem:[#allocation2] sm:$0xff]
    %v183 = vld [vmem:[%s2] sm:$0xff]
    %v184 = vld [vmem:[%s2 + $0x8] sm:$0xff]
    %v185 = vld [vmem:[%s2 + $0x10] sm:$0xff]
    %v186 = vld [vmem:[%s2 + $0x18] sm:$0xff]
    %vm187 = vcmask 261120
    %v189 = vsel %vm187, 0.0, 0
    %191 = vmatprep.subr.mxu0 0.0
    %192 = vmatpush1.msra.mxu0 %v183
    %193 = vmatprep.subr.mxu0 0.0
    %194 = vmatpush1.msra.mxu0 %v184
    %195 = vmatprep.subr.mxu0 0.0
    %196 = vmatpush1.msra.mxu0 %v185
    %197 = vmatprep.subr.mxu0 0.0
    %198 = vmatpush1.msra.mxu0 %v186
    %199 = vmatprep.subr.mxu0 0.0
    %200 = vmatpush1.msra.mxu0 0.0
    %201 = vmatprep.subr.mxu0 0.0
    %202 = vmatpush1.msra.mxu0 0.0
    %203 = vmatprep.subr.mxu0 0.0
    %204 = vmatpush1.msra.mxu0 0.0
    %205 = vmatprep.subr.mxu0 0.0
    %206 = vmatpush1.msra.mxu0 0.0
    %207 = vmatprep.subr.mxu0 0.0
    %208 = vmatpush1.msra.mxu0 0.0
    %209 = vmatprep.subr.mxu0 0.0
    %210 = vmatpush1.msra.mxu0 0.0
    %211 = vmatprep.subr.mxu0 0.0
    %212 = vmatpush1.msra.mxu0 0.0
    %213 = vmatprep.subr.mxu0 0.0
    %214 = vmatpush1.msra.mxu0 0.0
    %215 = vmatprep.subr.mxu0 0.0
    %216 = vmatpush1.msra.mxu0 0.0
    %217 = vmatprep.subr.mxu0 0.0
    %218 = vmatpush1.msra.mxu0 0.0
    %219 = vmatprep.subr.mxu0 0.0
    %220 = vmatpush1.msra.mxu0 0.0
    %221 = vmatprep.subr.mxu0 0.0
    %222 = vmatpush1.msra.mxu0 0.0
    %223 = vmatprep.subr.mxu0 0.0
    %224 = vmatpush1.msra.mxu0 0.0
    %225 = vmatprep.subr.mxu0 0.0
    %226 = vmatpush1.msra.mxu0 0.0
    %227 = vmatprep.subr.mxu0 0.0
    %228 = vmatpush1.msra.mxu0 0.0
    %229 = vmatprep.subr.mxu0 0.0
    %230 = vmatpush1.msra.mxu0 0.0
    %231 = vmatprep.subr.mxu0 0.0
    %232 = vmatpush1.msra.mxu0 0.0
    %233 = vmatprep.subr.mxu0 0.0
    %234 = vmatpush1.msra.mxu0 0.0
    %235 = vmatprep.subr.mxu0 0.0
    %236 = vmatpush1.msra.mxu0 0.0
    %237 = vmatprep.subr.mxu0 0.0
    %238 = vmatpush1.msra.mxu0 0.0
    %239 = vmatprep.subr.mxu0 0.0
    %240 = vmatpush1.msra.mxu0 0.0
    %241 = vmatprep.subr.mxu0 0.0
    %242 = vmatpush1.msra.mxu0 0.0
    %243 = vmatprep.subr.mxu0 0.0
    %244 = vmatpush1.msra.mxu0 0.0
    %245 = vmatprep.subr.mxu0 0.0
    %246 = vmatpush1.msra.mxu0 0.0
    %247 = vmatprep.subr.mxu0 0.0
    %248 = vmatpush1.msra.mxu0 0.0
    %249 = vmatprep.subr.mxu0 0.0
    %250 = vmatpush1.msra.mxu0 0.0
    %251 = vmatprep.subr.mxu0 0.0
    %252 = vmatpush1.msra.mxu0 0.0
    %253 = vmatprep.subr.mxu0 0.0
    %254 = vmatpush1.msra.mxu0 0.0
    %255 = vmatprep.mubr.f32.mxu0 0.0
    %256 = vmatmul.mubr.f32.gmra.mrb[0].mxu0 %v189
    %v257 = vpop.f32.mrb[0].mxu0
    %v258 = vadd.f32 0.0, %v257
    %v259 = vpop.f32.mrb[0].mxu0
    %260 = vdwg.mxu0
    %v261 = vadd.f32 %v182, %v258
    %v262 = vxor.u32 %v261, 2147483648
    %v263 = vmul.f32 %v262, 1.442695
    %v264 = vpow.pop %v263
    %v265 = vadd.f32 %v264, 1.0
    %v266 = vrcp.pop %v265
    %v267 = vmul.f32 1.0, %v266
    %v268 = vtanh.pop %v261
    %v269 = vmul.f32 %v267, 0.0
    %271 = vrot.lane.b32.xlu0 %v268, 64
    %v272 = vpop.permute.xlu0 %271
    %v274 = vmul.f32 %v267, %v272
    %276 = vrot.lane.b32.xlu0 %v274, 32
    %v277 = vpop.permute.xlu0 %276
    %v279 = vadd.f32 %v269, %v277
    %v280 = vtanh.pop %v279
    %282 = vrot.lane.b32.xlu0 %v280, 64
    %v283 = vpop.permute.xlu0 %282
    %v285 = vmul.f32 %v267, %v283
    %s286 = scalar_lea.vmem [#allocation2], 8
    %v287 = vld [vmem:[%s286] sm:$0xff]
    %289 = vrot.lane.b32.xlu0 %v285, 32
    %v290 = vpop.permute.xlu0 %289
    %v291 = vsel %vm187, %v290, 0
    %293 = vmatprep.subr.mxu0 0.0
    %294 = vmatpush1.msra.mxu0 %v183
    %295 = vmatprep.subr.mxu0 0.0
    %296 = vmatpush1.msra.mxu0 %v184
    %297 = vmatprep.subr.mxu0 0.0
    %298 = vmatpush1.msra.mxu0 %v185
    %299 = vmatprep.subr.mxu0 0.0
    %300 = vmatpush1.msra.mxu0 %v186
    %301 = vmatprep.subr.mxu0 0.0
    %302 = vmatpush1.msra.mxu0 0.0
    %303 = vmatprep.subr.mxu0 0.0
    %304 = vmatpush1.msra.mxu0 0.0
    %305 = vmatprep.subr.mxu0 0.0
    %306 = vmatpush1.msra.mxu0 0.0
    %307 = vmatprep.subr.mxu0 0.0
    %308 = vmatpush1.msra.mxu0 0.0
    %309 = vmatprep.subr.mxu0 0.0
    %310 = vmatpush1.msra.mxu0 0.0
    %311 = vmatprep.subr.mxu0 0.0
    %312 = vmatpush1.msra.mxu0 0.0
    %313 = vmatprep.subr.mxu0 0.0
    %314 = vmatpush1.msra.mxu0 0.0
    %315 = vmatprep.subr.mxu0 0.0
    %316 = vmatpush1.msra.mxu0 0.0
    %317 = vmatprep.subr.mxu0 0.0
    %318 = vmatpush1.msra.mxu0 0.0
    %319 = vmatprep.subr.mxu0 0.0
    %320 = vmatpush1.msra.mxu0 0.0
    %321 = vmatprep.subr.mxu0 0.0
    %322 = vmatpush1.msra.mxu0 0.0
    %323 = vmatprep.subr.mxu0 0.0
    %324 = vmatpush1.msra.mxu0 0.0
    %325 = vmatprep.subr.mxu0 0.0
    %326 = vmatpush1.msra.mxu0 0.0
    %327 = vmatprep.subr.mxu0 0.0
    %328 = vmatpush1.msra.mxu0 0.0
    %329 = vmatprep.subr.mxu0 0.0
    %330 = vmatpush1.msra.mxu0 0.0
    %331 = vmatprep.subr.mxu0 0.0
    %332 = vmatpush1.msra.mxu0 0.0
    %333 = vmatprep.subr.mxu0 0.0
    %334 = vmatpush1.msra.mxu0 0.0
    %335 = vmatprep.subr.mxu0 0.0
    %336 = vmatpush1.msra.mxu0 0.0
    %337 = vmatprep.subr.mxu0 0.0
    %338 = vmatpush1.msra.mxu0 0.0
    %339 = vmatprep.subr.mxu0 0.0
    %340 = vmatpush1.msra.mxu0 0.0
    %341 = vmatprep.subr.mxu0 0.0
    %342 = vmatpush1.msra.mxu0 0.0
    %343 = vmatprep.subr.mxu0 0.0
    %344 = vmatpush1.msra.mxu0 0.0
    %345 = vmatprep.subr.mxu0 0.0
    %346 = vmatpush1.msra.mxu0 0.0
    %347 = vmatprep.subr.mxu0 0.0
    %348 = vmatpush1.msra.mxu0 0.0
    %349 = vmatprep.subr.mxu0 0.0
    %350 = vmatpush1.msra.mxu0 0.0
    %351 = vmatprep.subr.mxu0 0.0
    %352 = vmatpush1.msra.mxu0 0.0
    %353 = vmatprep.subr.mxu0 0.0
    %354 = vmatpush1.msra.mxu0 0.0
    %355 = vmatprep.subr.mxu0 0.0
    %356 = vmatpush1.msra.mxu0 0.0
    %357 = vmatprep.mubr.f32.mxu0 0.0
    %358 = vmatmul.mubr.f32.gmra.mrb[0].mxu0 %v291
    %v359 = vpop.f32.mrb[0].mxu0
    %v360 = vadd.f32 0.0, %v359
    %v361 = vpop.f32.mrb[0].mxu0
    %362 = vdwg.mxu0
    %v363 = vadd.f32 %v287, %v360
    %v364 = vxor.u32 %v363, 2147483648
    %v365 = vmul.f32 %v364, 1.442695
    %v366 = vpow.pop %v365
    %v367 = vadd.f32 %v366, 1.0
    %v368 = vrcp.pop %v367
    %v369 = vmul.f32 1.0, %v368
    %v370 = vtanh.pop %v363
    %v371 = vmul.f32 %v369, %v279
    %373 = vrot.lane.b32.xlu0 %v370, 64
    %v374 = vpop.permute.xlu0 %373
    %v376 = vmul.f32 %v369, %v374
    %378 = vrot.lane.b32.xlu0 %v376, 32
    %v379 = vpop.permute.xlu0 %378
    %v381 = vadd.f32 %v371, %v379
    %v382 = vtanh.pop %v381
    %384 = vrot.lane.b32.xlu0 %v382, 64
    %v385 = vpop.permute.xlu0 %384
    %v387 = vmul.f32 %v369, %v385
    %s388 = scalar_lea.vmem [#allocation2], 16
    %v389 = vld [vmem:[%s388] sm:$0xff]
    %391 = vrot.lane.b32.xlu0 %v387, 32
    %v392 = vpop.permute.xlu0 %391
    %v393 = vsel %vm187, %v392, 0
    %395 = vmatprep.subr.mxu0 0.0
    %396 = vmatpush1.msra.mxu0 %v183
    %397 = vmatprep.subr.mxu0 0.0
    %398 = vmatpush1.msra.mxu0 %v184
    %399 = vmatprep.subr.mxu0 0.0
    %400 = vmatpush1.msra.mxu0 %v185
    %401 = vmatprep.subr.mxu0 0.0
    %402 = vmatpush1.msra.mxu0 %v186
    %403 = vmatprep.subr.mxu0 0.0
    %404 = vmatpush1.msra.mxu0 0.0
    %405 = vmatprep.subr.mxu0 0.0
    %406 = vmatpush1.msra.mxu0 0.0
    %407 = vmatprep.subr.mxu0 0.0
    %408 = vmatpush1.msra.mxu0 0.0
    %409 = vmatprep.subr.mxu0 0.0
    %410 = vmatpush1.msra.mxu0 0.0
    %411 = vmatprep.subr.mxu0 0.0
    %412 = vmatpush1.msra.mxu0 0.0
    %413 = vmatprep.subr.mxu0 0.0
    %414 = vmatpush1.msra.mxu0 0.0
    %415 = vmatprep.subr.mxu0 0.0
    %416 = vmatpush1.msra.mxu0 0.0
    %417 = vmatprep.subr.mxu0 0.0
    %418 = vmatpush1.msra.mxu0 0.0
    %419 = vmatprep.subr.mxu0 0.0
    %420 = vmatpush1.msra.mxu0 0.0
    %421 = vmatprep.subr.mxu0 0.0
    %422 = vmatpush1.msra.mxu0 0.0
    %423 = vmatprep.subr.mxu0 0.0
    %424 = vmatpush1.msra.mxu0 0.0
    %425 = vmatprep.subr.mxu0 0.0
    %426 = vmatpush1.msra.mxu0 0.0
    %427 = vmatprep.subr.mxu0 0.0
    %428 = vmatpush1.msra.mxu0 0.0
    %429 = vmatprep.subr.mxu0 0.0
    %430 = vmatpush1.msra.mxu0 0.0
    %431 = vmatprep.subr.mxu0 0.0
    %432 = vmatpush1.msra.mxu0 0.0
    %433 = vmatprep.subr.mxu0 0.0
    %434 = vmatpush1.msra.mxu0 0.0
    %435 = vmatprep.subr.mxu0 0.0
    %436 = vmatpush1.msra.mxu0 0.0
    %437 = vmatprep.subr.mxu0 0.0
    %438 = vmatpush1.msra.mxu0 0.0
    %439 = vmatprep.subr.mxu0 0.0
    %440 = vmatpush1.msra.mxu0 0.0
    %441 = vmatprep.subr.mxu0 0.0
    %442 = vmatpush1.msra.mxu0 0.0
    %443 = vmatprep.subr.mxu0 0.0
    %444 = vmatpush1.msra.mxu0 0.0
    %445 = vmatprep.subr.mxu0 0.0
    %446 = vmatpush1.msra.mxu0 0.0
    %447 = vmatprep.subr.mxu0 0.0
    %448 = vmatpush1.msra.mxu0 0.0
    %449 = vmatprep.subr.mxu0 0.0
    %450 = vmatpush1.msra.mxu0 0.0
    %451 = vmatprep.subr.mxu0 0.0
    %452 = vmatpush1.msra.mxu0 0.0
    %453 = vmatprep.subr.mxu0 0.0
    %454 = vmatpush1.msra.mxu0 0.0
    %455 = vmatprep.subr.mxu0 0.0
    %456 = vmatpush1.msra.mxu0 0.0
    %457 = vmatprep.subr.mxu0 0.0
    %458 = vmatpush1.msra.mxu0 0.0
    %459 = vmatprep.mubr.f32.mxu0 0.0
    %460 = vmatmul.mubr.f32.gmra.mrb[0].mxu0 %v393
    %v461 = vpop.f32.mrb[0].mxu0
    %v462 = vadd.f32 0.0, %v461
    %v463 = vpop.f32.mrb[0].mxu0
    %464 = vdwg.mxu0
    %v465 = vadd.f32 %v389, %v462
    %v466 = vxor.u32 %v465, 2147483648
    %v467 = vmul.f32 %v466, 1.442695
    %v468 = vpow.pop %v467
    %v469 = vadd.f32 %v468, 1.0
    %v470 = vrcp.pop %v469
    %v471 = vmul.f32 1.0, %v470
    %v472 = vtanh.pop %v465
    %v473 = vmul.f32 %v471, %v381
    %475 = vrot.lane.b32.xlu0 %v472, 64
    %v476 = vpop.permute.xlu0 %475
    %v478 = vmul.f32 %v471, %v476
    %480 = vrot.lane.b32.xlu0 %v478, 32
    %v481 = vpop.permute.xlu0 %480
    %v483 = vadd.f32 %v473, %v481
    %v484 = vtanh.pop %v483
    %486 = vrot.lane.b32.xlu0 %v484, 64
    %v487 = vpop.permute.xlu0 %486
    %v489 = vmul.f32 %v471, %v487
    %s490 = scalar_lea.vmem [#allocation2], 24
    %v491 = vld [vmem:[%s490] sm:$0xff]
    %493 = vrot.lane.b32.xlu0 %v489, 32
    %v494 = vpop.permute.xlu0 %493
    %v495 = vsel %vm187, %v494, 0
    %497 = vmatprep.subr.mxu0 0.0
    %498 = vmatpush1.msra.mxu0 %v183
    %499 = vmatprep.subr.mxu0 0.0
    %500 = vmatpush1.msra.mxu0 %v184
    %501 = vmatprep.subr.mxu0 0.0
    %502 = vmatpush1.msra.mxu0 %v185
    %503 = vmatprep.subr.mxu0 0.0
    %504 = vmatpush1.msra.mxu0 %v186
    %505 = vmatprep.subr.mxu0 0.0
    %506 = vmatpush1.msra.mxu0 0.0
    %507 = vmatprep.subr.mxu0 0.0
    %508 = vmatpush1.msra.mxu0 0.0
    %509 = vmatprep.subr.mxu0 0.0
    %510 = vmatpush1.msra.mxu0 0.0
    %511 = vmatprep.subr.mxu0 0.0
    %512 = vmatpush1.msra.mxu0 0.0
    %513 = vmatprep.subr.mxu0 0.0
    %514 = vmatpush1.msra.mxu0 0.0
    %515 = vmatprep.subr.mxu0 0.0
    %516 = vmatpush1.msra.mxu0 0.0
    %517 = vmatprep.subr.mxu0 0.0
    %518 = vmatpush1.msra.mxu0 0.0
    %519 = vmatprep.subr.mxu0 0.0
    %520 = vmatpush1.msra.mxu0 0.0
    %521 = vmatprep.subr.mxu0 0.0
    %522 = vmatpush1.msra.mxu0 0.0
    %523 = vmatprep.subr.mxu0 0.0
    %524 = vmatpush1.msra.mxu0 0.0
    %525 = vmatprep.subr.mxu0 0.0
    %526 = vmatpush1.msra.mxu0 0.0
    %527 = vmatprep.subr.mxu0 0.0
    %528 = vmatpush1.msra.mxu0 0.0
    %529 = vmatprep.subr.mxu0 0.0
    %530 = vmatpush1.msra.mxu0 0.0
    %531 = vmatprep.subr.mxu0 0.0
    %532 = vmatpush1.msra.mxu0 0.0
    %533 = vmatprep.subr.mxu0 0.0
    %534 = vmatpush1.msra.mxu0 0.0
    %535 = vmatprep.subr.mxu0 0.0
    %536 = vmatpush1.msra.mxu0 0.0
    %537 = vmatprep.subr.mxu0 0.0
    %538 = vmatpush1.msra.mxu0 0.0
    %539 = vmatprep.subr.mxu0 0.0
    %540 = vmatpush1.msra.mxu0 0.0
    %541 = vmatprep.subr.mxu0 0.0
    %542 = vmatpush1.msra.mxu0 0.0
    %543 = vmatprep.subr.mxu0 0.0
    %544 = vmatpush1.msra.mxu0 0.0
    %545 = vmatprep.subr.mxu0 0.0
    %546 = vmatpush1.msra.mxu0 0.0
    %547 = vmatprep.subr.mxu0 0.0
    %548 = vmatpush1.msra.mxu0 0.0
    %549 = vmatprep.subr.mxu0 0.0
    %550 = vmatpush1.msra.mxu0 0.0
    %551 = vmatprep.subr.mxu0 0.0
    %552 = vmatpush1.msra.mxu0 0.0
    %553 = vmatprep.subr.mxu0 0.0
    %554 = vmatpush1.msra.mxu0 0.0
    %555 = vmatprep.subr.mxu0 0.0
    %556 = vmatpush1.msra.mxu0 0.0
    %557 = vmatprep.subr.mxu0 0.0
    %558 = vmatpush1.msra.mxu0 0.0
    %559 = vmatprep.subr.mxu0 0.0
    %560 = vmatpush1.msra.mxu0 0.0
    %561 = vmatprep.mubr.f32.mxu0 0.0
    %562 = vmatmul.mubr.f32.gmra.mrb[0].mxu0 %v495
    %v563 = vpop.f32.mrb[0].mxu0
    %v564 = vadd.f32 0.0, %v563
    %v565 = vpop.f32.mrb[0].mxu0
    %566 = vdwg.mxu0
    %v567 = vadd.f32 %v491, %v564
    %v568 = vxor.u32 %v567, 2147483648
    %v569 = vmul.f32 %v568, 1.442695
    %v570 = vpow.pop %v569
    %v571 = vadd.f32 %v570, 1.0
    %v572 = vrcp.pop %v571
    %v573 = vmul.f32 1.0, %v572
    %v574 = vtanh.pop %v567
    %v575 = vmul.f32 %v573, %v483
    %577 = vrot.lane.b32.xlu0 %v574, 64
    %v578 = vpop.permute.xlu0 %577
    %v580 = vmul.f32 %v573, %v578
    %582 = vrot.lane.b32.xlu0 %v580, 32
    %v583 = vpop.permute.xlu0 %582
    %v585 = vadd.f32 %v575, %v583
    %v586 = vtanh.pop %v585
    %588 = vrot.lane.b32.xlu0 %v586, 64
    %v589 = vpop.permute.xlu0 %588
    %v591 = vmul.f32 %v573, %v589
    %s592 = scalar_lea.vmem [#allocation2], 32
    %v593 = vld [vmem:[%s592] sm:$0xff]
    %595 = vrot.lane.b32.xlu0 %v591, 32
    %v596 = vpop.permute.xlu0 %595
    %v597 = vsel %vm187, %v596, 0
    %599 = vmatprep.subr.mxu0 0.0
    %600 = vmatpush1.msra.mxu0 %v183
    %601 = vmatprep.subr.mxu0 0.0
    %602 = vmatpush1.msra.mxu0 %v184
    %603 = vmatprep.subr.mxu0 0.0
    %604 = vmatpush1.msra.mxu0 %v185
    %605 = vmatprep.subr.mxu0 0.0
    %606 = vmatpush1.msra.mxu0 %v186
    %607 = vmatprep.subr.mxu0 0.0
    %608 = vmatpush1.msra.mxu0 0.0
    %609 = vmatprep.subr.mxu0 0.0
    %610 = vmatpush1.msra.mxu0 0.0
    %611 = vmatprep.subr.mxu0 0.0
    %612 = vmatpush1.msra.mxu0 0.0
    %613 = vmatprep.subr.mxu0 0.0
    %614 = vmatpush1.msra.mxu0 0.0
    %615 = vmatprep.subr.mxu0 0.0
    %616 = vmatpush1.msra.mxu0 0.0
    %617 = vmatprep.subr.mxu0 0.0
    %618 = vmatpush1.msra.mxu0 0.0
    %619 = vmatprep.subr.mxu0 0.0
    %620 = vmatpush1.msra.mxu0 0.0
    %621 = vmatprep.subr.mxu0 0.0
    %622 = vmatpush1.msra.mxu0 0.0
    %623 = vmatprep.subr.mxu0 0.0
    %624 = vmatpush1.msra.mxu0 0.0
    %625 = vmatprep.subr.mxu0 0.0
    %626 = vmatpush1.msra.mxu0 0.0
    %627 = vmatprep.subr.mxu0 0.0
    %628 = vmatpush1.msra.mxu0 0.0
    %629 = vmatprep.subr.mxu0 0.0
    %630 = vmatpush1.msra.mxu0 0.0
    %631 = vmatprep.subr.mxu0 0.0
    %632 = vmatpush1.msra.mxu0 0.0
    %633 = vmatprep.subr.mxu0 0.0
    %634 = vmatpush1.msra.mxu0 0.0
    %635 = vmatprep.subr.mxu0 0.0
    %636 = vmatpush1.msra.mxu0 0.0
    %637 = vmatprep.subr.mxu0 0.0
    %638 = vmatpush1.msra.mxu0 0.0
    %639 = vmatprep.subr.mxu0 0.0
    %640 = vmatpush1.msra.mxu0 0.0
    %641 = vmatprep.subr.mxu0 0.0
    %642 = vmatpush1.msra.mxu0 0.0
    %643 = vmatprep.subr.mxu0 0.0
    %644 = vmatpush1.msra.mxu0 0.0
    %645 = vmatprep.subr.mxu0 0.0
    %646 = vmatpush1.msra.mxu0 0.0
    %647 = vmatprep.subr.mxu0 0.0
    %648 = vmatpush1.msra.mxu0 0.0
    %649 = vmatprep.subr.mxu0 0.0
    %650 = vmatpush1.msra.mxu0 0.0
    %651 = vmatprep.subr.mxu0 0.0
    %652 = vmatpush1.msra.mxu0 0.0
    %653 = vmatprep.subr.mxu0 0.0
    %654 = vmatpush1.msra.mxu0 0.0
    %655 = vmatprep.subr.mxu0 0.0
    %656 = vmatpush1.msra.mxu0 0.0
    %657 = vmatprep.subr.mxu0 0.0
    %658 = vmatpush1.msra.mxu0 0.0
    %659 = vmatprep.subr.mxu0 0.0
    %660 = vmatpush1.msra.mxu0 0.0
    %661 = vmatprep.subr.mxu0 0.0
    %662 = vmatpush1.msra.mxu0 0.0
    %663 = vmatprep.mubr.f32.mxu0 0.0
    %664 = vmatmul.mubr.f32.gmra.mrb[0].mxu0 %v597
    %v665 = vpop.f32.mrb[0].mxu0
    %v666 = vadd.f32 0.0, %v665
    %v667 = vpop.f32.mrb[0].mxu0
    %668 = vdwg.mxu0
    %v669 = vadd.f32 %v593, %v666
    %v670 = vxor.u32 %v669, 2147483648
    %v671 = vmul.f32 %v670, 1.442695
    %v672 = vpow.pop %v671
    %v673 = vadd.f32 %v672, 1.0
    %v674 = vrcp.pop %v673
    %v675 = vmul.f32 1.0, %v674
    %v676 = vtanh.pop %v669
    %v677 = vmul.f32 %v675, %v585
    %679 = vrot.lane.b32.xlu0 %v676, 64
    %v680 = vpop.permute.xlu0 %679
    %v682 = vmul.f32 %v675, %v680
    %684 = vrot.lane.b32.xlu0 %v682, 32
    %v685 = vpop.permute.xlu0 %684
    %v687 = vadd.f32 %v677, %v685
    %v688 = vtanh.pop %v687
    %690 = vrot.lane.b32.xlu0 %v688, 64
    %v691 = vpop.permute.xlu0 %690
    %v693 = vmul.f32 %v675, %v691
    %s694 = scalar_lea.vmem [#allocation2], 40
    %v695 = vld [vmem:[%s694] sm:$0xff]
    %697 = vrot.lane.b32.xlu0 %v693, 32
    %v698 = vpop.permute.xlu0 %697
    %v699 = vsel %vm187, %v698, 0
    %701 = vmatprep.subr.mxu0 0.0
    %702 = vmatpush1.msra.mxu0 %v183
    %703 = vmatprep.subr.mxu0 0.0
    %704 = vmatpush1.msra.mxu0 %v184
    %705 = vmatprep.subr.mxu0 0.0
    %706 = vmatpush1.msra.mxu0 %v185
    %707 = vmatprep.subr.mxu0 0.0
    %708 = vmatpush1.msra.mxu0 %v186
    %709 = vmatprep.subr.mxu0 0.0
    %710 = vmatpush1.msra.mxu0 0.0
    %711 = vmatprep.subr.mxu0 0.0
    %712 = vmatpush1.msra.mxu0 0.0
    %713 = vmatprep.subr.mxu0 0.0
    %714 = vmatpush1.msra.mxu0 0.0
    %715 = vmatprep.subr.mxu0 0.0
    %716 = vmatpush1.msra.mxu0 0.0
    %717 = vmatprep.subr.mxu0 0.0
    %718 = vmatpush1.msra.mxu0 0.0
    %719 = vmatprep.subr.mxu0 0.0
    %720 = vmatpush1.msra.mxu0 0.0
    %721 = vmatprep.subr.mxu0 0.0
    %722 = vmatpush1.msra.mxu0 0.0
    %723 = vmatprep.subr.mxu0 0.0
    %724 = vmatpush1.msra.mxu0 0.0
    %725 = vmatprep.subr.mxu0 0.0
    %726 = vmatpush1.msra.mxu0 0.0
    %727 = vmatprep.subr.mxu0 0.0
    %728 = vmatpush1.msra.mxu0 0.0
    %729 = vmatprep.subr.mxu0 0.0
    %730 = vmatpush1.msra.mxu0 0.0
    %731 = vmatprep.subr.mxu0 0.0
    %732 = vmatpush1.msra.mxu0 0.0
    %733 = vmatprep.subr.mxu0 0.0
    %734 = vmatpush1.msra.mxu0 0.0
    %735 = vmatprep.subr.mxu0 0.0
    %736 = vmatpush1.msra.mxu0 0.0
    %737 = vmatprep.subr.mxu0 0.0
    %738 = vmatpush1.msra.mxu0 0.0
    %739 = vmatprep.subr.mxu0 0.0
    %740 = vmatpush1.msra.mxu0 0.0
    %741 = vmatprep.subr.mxu0 0.0
    %742 = vmatpush1.msra.mxu0 0.0
    %743 = vmatprep.subr.mxu0 0.0
    %744 = vmatpush1.msra.mxu0 0.0
    %745 = vmatprep.subr.mxu0 0.0
    %746 = vmatpush1.msra.mxu0 0.0
    %747 = vmatprep.subr.mxu0 0.0
    %748 = vmatpush1.msra.mxu0 0.0
    %749 = vmatprep.subr.mxu0 0.0
    %750 = vmatpush1.msra.mxu0 0.0
    %751 = vmatprep.subr.mxu0 0.0
    %752 = vmatpush1.msra.mxu0 0.0
    %753 = vmatprep.subr.mxu0 0.0
    %754 = vmatpush1.msra.mxu0 0.0
    %755 = vmatprep.subr.mxu0 0.0
    %756 = vmatpush1.msra.mxu0 0.0
    %757 = vmatprep.subr.mxu0 0.0
    %758 = vmatpush1.msra.mxu0 0.0
    %759 = vmatprep.subr.mxu0 0.0
    %760 = vmatpush1.msra.mxu0 0.0
    %761 = vmatprep.subr.mxu0 0.0
    %762 = vmatpush1.msra.mxu0 0.0
    %763 = vmatprep.subr.mxu0 0.0
    %764 = vmatpush1.msra.mxu0 0.0
    %765 = vmatprep.mubr.f32.mxu0 0.0
    %766 = vmatmul.mubr.f32.gmra.mrb[0].mxu0 %v699
    %v767 = vpop.f32.mrb[0].mxu0
    %v768 = vadd.f32 0.0, %v767
    %v769 = vpop.f32.mrb[0].mxu0
    %770 = vdwg.mxu0
    %v771 = vadd.f32 %v695, %v768
    %v772 = vxor.u32 %v771, 2147483648
    %v773 = vmul.f32 %v772, 1.442695
    %v774 = vpow.pop %v773
    %v775 = vadd.f32 %v774, 1.0
    %v776 = vrcp.pop %v775
    %v777 = vmul.f32 1.0, %v776
    %v778 = vtanh.pop %v771
    %v779 = vmul.f32 %v777, %v687
    %781 = vrot.lane.b32.xlu0 %v778, 64
    %v782 = vpop.permute.xlu0 %781
    %v784 = vmul.f32 %v777, %v782
    %786 = vrot.lane.b32.xlu0 %v784, 32
    %v787 = vpop.permute.xlu0 %786
    %v789 = vadd.f32 %v779, %v787
    %v790 = vtanh.pop %v789
    %792 = vrot.lane.b32.xlu0 %v790, 64
    %v793 = vpop.permute.xlu0 %792
    %v795 = vmul.f32 %v777, %v793
    %s796 = scalar_lea.vmem [#allocation2], 48
    %v797 = vld [vmem:[%s796] sm:$0xff]
    %799 = vrot.lane.b32.xlu0 %v795, 32
    %v800 = vpop.permute.xlu0 %799
    %v801 = vsel %vm187, %v800, 0
    %803 = vmatprep.subr.mxu0 0.0
    %804 = vmatpush1.msra.mxu0 %v183
    %805 = vmatprep.subr.mxu0 0.0
    %806 = vmatpush1.msra.mxu0 %v184
    %807 = vmatprep.subr.mxu0 0.0
    %808 = vmatpush1.msra.mxu0 %v185
    %809 = vmatprep.subr.mxu0 0.0
    %810 = vmatpush1.msra.mxu0 %v186
    %811 = vmatprep.subr.mxu0 0.0
    %812 = vmatpush1.msra.mxu0 0.0
    %813 = vmatprep.subr.mxu0 0.0
    %814 = vmatpush1.msra.mxu0 0.0
    %815 = vmatprep.subr.mxu0 0.0
    %816 = vmatpush1.msra.mxu0 0.0
    %817 = vmatprep.subr.mxu0 0.0
    %818 = vmatpush1.msra.mxu0 0.0
    %819 = vmatprep.subr.mxu0 0.0
    %820 = vmatpush1.msra.mxu0 0.0
    %821 = vmatprep.subr.mxu0 0.0
    %822 = vmatpush1.msra.mxu0 0.0
    %823 = vmatprep.subr.mxu0 0.0
    %824 = vmatpush1.msra.mxu0 0.0
    %825 = vmatprep.subr.mxu0 0.0
    %826 = vmatpush1.msra.mxu0 0.0
    %827 = vmatprep.subr.mxu0 0.0
    %828 = vmatpush1.msra.mxu0 0.0
    %829 = vmatprep.subr.mxu0 0.0
    %830 = vmatpush1.msra.mxu0 0.0
    %831 = vmatprep.subr.mxu0 0.0
    %832 = vmatpush1.msra.mxu0 0.0
    %833 = vmatprep.subr.mxu0 0.0
    %834 = vmatpush1.msra.mxu0 0.0
    %835 = vmatprep.subr.mxu0 0.0
    %836 = vmatpush1.msra.mxu0 0.0
    %837 = vmatprep.subr.mxu0 0.0
    %838 = vmatpush1.msra.mxu0 0.0
    %839 = vmatprep.subr.mxu0 0.0
    %840 = vmatpush1.msra.mxu0 0.0
    %841 = vmatprep.subr.mxu0 0.0
    %842 = vmatpush1.msra.mxu0 0.0
    %843 = vmatprep.subr.mxu0 0.0
    %844 = vmatpush1.msra.mxu0 0.0
    %845 = vmatprep.subr.mxu0 0.0
    %846 = vmatpush1.msra.mxu0 0.0
    %847 = vmatprep.subr.mxu0 0.0
    %848 = vmatpush1.msra.mxu0 0.0
    %849 = vmatprep.subr.mxu0 0.0
    %850 = vmatpush1.msra.mxu0 0.0
    %851 = vmatprep.subr.mxu0 0.0
    %852 = vmatpush1.msra.mxu0 0.0
    %853 = vmatprep.subr.mxu0 0.0
    %854 = vmatpush1.msra.mxu0 0.0
    %855 = vmatprep.subr.mxu0 0.0
    %856 = vmatpush1.msra.mxu0 0.0
    %857 = vmatprep.subr.mxu0 0.0
    %858 = vmatpush1.msra.mxu0 0.0
    %859 = vmatprep.subr.mxu0 0.0
    %860 = vmatpush1.msra.mxu0 0.0
    %861 = vmatprep.subr.mxu0 0.0
    %862 = vmatpush1.msra.mxu0 0.0
    %863 = vmatprep.subr.mxu0 0.0
    %864 = vmatpush1.msra.mxu0 0.0
    %865 = vmatprep.subr.mxu0 0.0
    %866 = vmatpush1.msra.mxu0 0.0
    %867 = vmatprep.mubr.f32.mxu0 0.0
    %868 = vmatmul.mubr.f32.gmra.mrb[0].mxu0 %v801
    %v869 = vpop.f32.mrb[0].mxu0
    %v870 = vadd.f32 0.0, %v869
    %v871 = vpop.f32.mrb[0].mxu0
    %872 = vdwg.mxu0
    %v873 = vadd.f32 %v797, %v870
    %v874 = vxor.u32 %v873, 2147483648
    %v875 = vmul.f32 %v874, 1.442695
    %v876 = vpow.pop %v875
    %v877 = vadd.f32 %v876, 1.0
    %v878 = vrcp.pop %v877
    %v879 = vmul.f32 1.0, %v878
    %v880 = vtanh.pop %v873
    %v881 = vmul.f32 %v879, %v789
    %883 = vrot.lane.b32.xlu0 %v880, 64
    %v884 = vpop.permute.xlu0 %883
    %v886 = vmul.f32 %v879, %v884
    %888 = vrot.lane.b32.xlu0 %v886, 32
    %v889 = vpop.permute.xlu0 %888
    %v891 = vadd.f32 %v881, %v889
    %v892 = vtanh.pop %v891
    %894 = vrot.lane.b32.xlu0 %v892, 64
    %v895 = vpop.permute.xlu0 %894
    %v897 = vmul.f32 %v879, %v895
    %s898 = scalar_lea.vmem [#allocation2], 56
    %v899 = vld [vmem:[%s898] sm:$0xff]
    %901 = vrot.lane.b32.xlu0 %v897, 32
    %v902 = vpop.permute.xlu0 %901
    %v903 = vsel %vm187, %v902, 0
    %905 = vmatprep.subr.mxu0 0.0
    %906 = vmatpush1.msra.mxu0 %v183
    %907 = vmatprep.subr.mxu0 0.0
    %908 = vmatpush1.msra.mxu0 %v184
    %909 = vmatprep.subr.mxu0 0.0
    %910 = vmatpush1.msra.mxu0 %v185
    %911 = vmatprep.subr.mxu0 0.0
    %912 = vmatpush1.msra.mxu0 %v186
    %913 = vmatprep.subr.mxu0 0.0
    %914 = vmatpush1.msra.mxu0 0.0
    %915 = vmatprep.subr.mxu0 0.0
    %916 = vmatpush1.msra.mxu0 0.0
    %917 = vmatprep.subr.mxu0 0.0
    %918 = vmatpush1.msra.mxu0 0.0
    %919 = vmatprep.subr.mxu0 0.0
    %920 = vmatpush1.msra.mxu0 0.0
    %921 = vmatprep.subr.mxu0 0.0
    %922 = vmatpush1.msra.mxu0 0.0
    %923 = vmatprep.subr.mxu0 0.0
    %924 = vmatpush1.msra.mxu0 0.0
    %925 = vmatprep.subr.mxu0 0.0
    %926 = vmatpush1.msra.mxu0 0.0
    %927 = vmatprep.subr.mxu0 0.0
    %928 = vmatpush1.msra.mxu0 0.0
    %929 = vmatprep.subr.mxu0 0.0
    %930 = vmatpush1.msra.mxu0 0.0
    %931 = vmatprep.subr.mxu0 0.0
    %932 = vmatpush1.msra.mxu0 0.0
    %933 = vmatprep.subr.mxu0 0.0
    %934 = vmatpush1.msra.mxu0 0.0
    %935 = vmatprep.subr.mxu0 0.0
    %936 = vmatpush1.msra.mxu0 0.0
    %937 = vmatprep.subr.mxu0 0.0
    %938 = vmatpush1.msra.mxu0 0.0
    %939 = vmatprep.subr.mxu0 0.0
    %940 = vmatpush1.msra.mxu0 0.0
    %941 = vmatprep.subr.mxu0 0.0
    %942 = vmatpush1.msra.mxu0 0.0
    %943 = vmatprep.subr.mxu0 0.0
    %944 = vmatpush1.msra.mxu0 0.0
    %945 = vmatprep.subr.mxu0 0.0
    %946 = vmatpush1.msra.mxu0 0.0
    %947 = vmatprep.subr.mxu0 0.0
    %948 = vmatpush1.msra.mxu0 0.0
    %949 = vmatprep.subr.mxu0 0.0
    %950 = vmatpush1.msra.mxu0 0.0
    %951 = vmatprep.subr.mxu0 0.0
    %952 = vmatpush1.msra.mxu0 0.0
    %953 = vmatprep.subr.mxu0 0.0
    %954 = vmatpush1.msra.mxu0 0.0
    %955 = vmatprep.subr.mxu0 0.0
    %956 = vmatpush1.msra.mxu0 0.0
    %957 = vmatprep.subr.mxu0 0.0
    %958 = vmatpush1.msra.mxu0 0.0
    %959 = vmatprep.subr.mxu0 0.0
    %960 = vmatpush1.msra.mxu0 0.0
    %961 = vmatprep.subr.mxu0 0.0
    %962 = vmatpush1.msra.mxu0 0.0
    %963 = vmatprep.subr.mxu0 0.0
    %964 = vmatpush1.msra.mxu0 0.0
    %965 = vmatprep.subr.mxu0 0.0
    %966 = vmatpush1.msra.mxu0 0.0
    %967 = vmatprep.subr.mxu0 0.0
    %968 = vmatpush1.msra.mxu0 0.0
    %969 = vmatprep.mubr.f32.mxu0 0.0
    %970 = vmatmul.mubr.f32.gmra.mrb[0].mxu0 %v903
    %v971 = vpop.f32.mrb[0].mxu0
    %v972 = vadd.f32 0.0, %v971
    %v973 = vpop.f32.mrb[0].mxu0
    %974 = vdwg.mxu0
    %v975 = vadd.f32 %v899, %v972
    %v976 = vxor.u32 %v975, 2147483648
    %v977 = vmul.f32 %v976, 1.442695
    %v978 = vpow.pop %v977
    %v979 = vadd.f32 %v978, 1.0
    %v980 = vrcp.pop %v979
    %v981 = vmul.f32 1.0, %v980
    %v982 = vtanh.pop %v975
    %v983 = vmul.f32 %v981, %v891
    %985 = vrot.lane.b32.xlu0 %v982, 64
    %v986 = vpop.permute.xlu0 %985
    %v988 = vmul.f32 %v981, %v986
    %990 = vrot.lane.b32.xlu0 %v988, 32
    %v991 = vpop.permute.xlu0 %990
    %v993 = vadd.f32 %v983, %v991
    %v994 = vtanh.pop %v993
    %996 = vrot.lane.b32.xlu0 %v994, 64
    %v997 = vpop.permute.xlu0 %996
    %v999 = vmul.f32 %v981, %v997
    %v1000 = vld [vmem:[%s4] sm:$0xff]
    %v1001 = vld [vmem:[%s4 + $0x8] sm:$0xff]
    %v1002 = vld [vmem:[%s4 + $0x10] sm:$0xff]
    %v1003 = vld [vmem:[%s4 + $0x18] sm:$0xff]
    %v1004 = vld [vmem:[%s5] sm:$0x1]
    %v1006 = vlaneseq
    %v1007 = vshrl.u32 %v1006, 7
    %v1008 = vsub.s32 0, %v1007
    %v1009 = vrot.slane %v1004, %v1008
    %1012 = vrot.lane.b32.xlu0 %v999, 32
    %v1013 = vpop.permute.xlu0 %1012
    %v1014 = vsel %vm187, %v1013, 0
    %1016 = vmatprep.subr.mxu0 0.0
    %1017 = vmatpush1.msra.mxu0 %v1000
    %1018 = vmatprep.subr.mxu0 0.0
    %1019 = vmatpush1.msra.mxu0 %v1001
    %1020 = vmatprep.subr.mxu0 0.0
    %1021 = vmatpush1.msra.mxu0 %v1002
    %1022 = vmatprep.subr.mxu0 0.0
    %1023 = vmatpush1.msra.mxu0 %v1003
    %1024 = vmatprep.subr.mxu0 0.0
    %1025 = vmatpush1.msra.mxu0 0.0
    %1026 = vmatprep.subr.mxu0 0.0
    %1027 = vmatpush1.msra.mxu0 0.0
    %1028 = vmatprep.subr.mxu0 0.0
    %1029 = vmatpush1.msra.mxu0 0.0
    %1030 = vmatprep.subr.mxu0 0.0
    %1031 = vmatpush1.msra.mxu0 0.0
    %1032 = vmatprep.subr.mxu0 0.0
    %1033 = vmatpush1.msra.mxu0 0.0
    %1034 = vmatprep.subr.mxu0 0.0
    %1035 = vmatpush1.msra.mxu0 0.0
    %1036 = vmatprep.subr.mxu0 0.0
    %1037 = vmatpush1.msra.mxu0 0.0
    %1038 = vmatprep.subr.mxu0 0.0
    %1039 = vmatpush1.msra.mxu0 0.0
    %1040 = vmatprep.subr.mxu0 0.0
    %1041 = vmatpush1.msra.mxu0 0.0
    %1042 = vmatprep.subr.mxu0 0.0
    %1043 = vmatpush1.msra.mxu0 0.0
    %1044 = vmatprep.subr.mxu0 0.0
    %1045 = vmatpush1.msra.mxu0 0.0
    %1046 = vmatprep.subr.mxu0 0.0
    %1047 = vmatpush1.msra.mxu0 0.0
    %1048 = vmatprep.subr.mxu0 0.0
    %1049 = vmatpush1.msra.mxu0 0.0
    %1050 = vmatprep.subr.mxu0 0.0
    %1051 = vmatpush1.msra.mxu0 0.0
    %1052 = vmatprep.subr.mxu0 0.0
    %1053 = vmatpush1.msra.mxu0 0.0
    %1054 = vmatprep.subr.mxu0 0.0
    %1055 = vmatpush1.msra.mxu0 0.0
    %1056 = vmatprep.subr.mxu0 0.0
    %1057 = vmatpush1.msra.mxu0 0.0
    %1058 = vmatprep.subr.mxu0 0.0
    %1059 = vmatpush1.msra.mxu0 0.0
    %1060 = vmatprep.subr.mxu0 0.0
    %1061 = vmatpush1.msra.mxu0 0.0
    %1062 = vmatprep.subr.mxu0 0.0
    %1063 = vmatpush1.msra.mxu0 0.0
    %1064 = vmatprep.subr.mxu0 0.0
    %1065 = vmatpush1.msra.mxu0 0.0
    %1066 = vmatprep.subr.mxu0 0.0
    %1067 = vmatpush1.msra.mxu0 0.0
    %1068 = vmatprep.subr.mxu0 0.0
    %1069 = vmatpush1.msra.mxu0 0.0
    %1070 = vmatprep.subr.mxu0 0.0
    %1071 = vmatpush1.msra.mxu0 0.0
    %1072 = vmatprep.subr.mxu0 0.0
    %1073 = vmatpush1.msra.mxu0 0.0
    %1074 = vmatprep.subr.mxu0 0.0
    %1075 = vmatpush1.msra.mxu0 0.0
    %1076 = vmatprep.subr.mxu0 0.0
    %1077 = vmatpush1.msra.mxu0 0.0
    %1078 = vmatprep.subr.mxu0 0.0
    %1079 = vmatpush1.msra.mxu0 0.0
    %1080 = vmatprep.mubr.f32.mxu0 0.0
    %1081 = vmatmul.mubr.f32.gmra.mrb[0].mxu0 %v1014
    %v1082 = vpop.f32.mrb[0].mxu0
    %v1083 = vadd.f32 %v1009, %v1082
    %v1084 = vpop.f32.mrb[0].mxu0
    %1085 = vdwg.mxu0
    %1086 = vst [vmem:[#allocation3] sm:$0xff] %v1083
    // Predicated region
    $region26: #{tpu_custom_call.1} parent=1 // pred_check
      _
    $region27: #{tpu_custom_call.1} parent=1 // pred_check_branch
      %1088 = sbr.rel (0) target = $region29
    $region28: #{tpu_custom_call.1} parent=1 // pred_region
      %s1090 = ssub.s32 128, 128
      %1091 = vsyncadd [#allocation4], %s1090
      %s1093 = sshll.u32 [#allocation3], 4
      %s1094 = int_to_ptr.vmem [resolvable:$true] %s1093
      %1096 = dma.vmem_to_hbm [thread:$0]  %s1094, 128, %s6, [#allocation4]
    $region29: #{tpu_custom_call.1} parent=1 // pred_fallthru
      _
    // Predicated region
    $region30: #{tpu_custom_call.1} parent=1 // pred_check
      _
    $region31: #{tpu_custom_call.1} parent=1 // pred_check_branch
      %1098 = sbr.rel (0) target = $region33
    $region32: #{tpu_custom_call.1} parent=1 // pred_region
      %1099 = dma.done [#allocation4], 128
    $region33: #{tpu_custom_call.1} parent=1 // pred_fallthru
      _
    %1100 = vsyncpa [#allocation4], 1

</llo_original>
